<compile_context>
chip_gen: v7x
topology: tpu7x:2x2x1
jax: 0.10.0
libtpu: 0.0.40
codegen_flags: <defaults>
</compile_context>

<pallas_src>
import jax
import jax.numpy as jnp
from jax.experimental import pallas as pl
from jax.experimental.pallas import tpu as pltpu

LANE = 128    # lane-padded channel width (dense 128-wide output stores)
_EPS = 1e-5   # BatchNorm eps (PyTorch default)

# VMEM planning budgets / scoped limits (bytes).  Conservative enough for
# v7x's 64 MiB physical VMEM while still allowing >=512-row streaming tiles
# on v5e/v6e (128 MiB).
_MM_VMEM_BUDGET = 36 * 1024 * 1024
_MM_VMEM_LIMIT = 44 * 1024 * 1024
_EPI_VMEM_BUDGET = 24 * 1024 * 1024
_EPI_VMEM_LIMIT = 32 * 1024 * 1024
_W_RESIDENT_BYTES = 6 * 1024 * 1024   # keep whole (K, cp) bf16 weight in VMEM below this

_ROW_TILES = (4096, 2048, 1024, 512, 256, 128, 64, 32, 16, 8)


def _round_up(x, m):
    return (x + m - 1) // m * m


def _weight_resident(k, cp):
    return k * cp * 2 <= _W_RESIDENT_BYTES


def _pick_k_tile(k, cp):
    # K is always padded to a multiple of 128.  When the whole bf16 weight is
    # small enough to sit in VMEM and K is short, use a single K step.
    if _weight_resident(k, cp) and k <= 1024:
        return k
    for t in (512, 256, 128):
        if k % t == 0:
            return t
    return 128


def _pick_row_tile(m, per_row_bytes, budget):
    """Largest row tile whose live VMEM footprint fits `budget`, preferring at
    least two row blocks so both v7x TensorCores get work on the parallel axis
    (mem-bound streaming kernels want >=512 rows when M allows)."""
    limit = max(m // 2, _ROW_TILES[-1])
    for t in _ROW_TILES:
        if t * per_row_bytes <= budget and t <= limit:
            return t
    return _ROW_TILES[-1]


def _pick_epi_tile(tm, cp):
    # Worst epilogue: two double-buffered bf16 input streams + f32 output.
    per_row = 2 * (2 * cp * 2) + 2 * cp * 4
    t = tm
    while t > _ROW_TILES[-1] and t * per_row > _EPI_VMEM_BUDGET:
        t //= 2
    return t


# ----------------------------- Pallas kernels -------------------------------

def _conv_mm_stats_kernel(lhs_ref, w_ref, out_ref, psum_ref, psq_ref, acc_ref):
    """bf16 (tm, tk) @ (tk|K, cp) accumulated over the K grid axis in f32.

    On the last K step the result tile is emitted in bf16 together with its
    per-channel sum and sum-of-squares (taken from the f32 accumulator), so
    BatchNorm statistics never re-read the raw activation from HBM.
    The weight ref is either a per-K-step (tk, cp) block or the whole (K, cp)
    weight kept VMEM-resident (constant index_map); the branch is static.
    """
    k = pl.program_id(1)

    @pl.when(k == 0)
    def _():
        acc_ref[...] = jnp.zeros_like(acc_ref)

    tk = lhs_ref.shape[1]
    if w_ref.shape[0] == tk:                       # per-step weight block
        w = w_ref[...]
    else:                                          # fully resident (K, cp) weight
        start = pl.multiple_of(k * tk, tk)
        w = w_ref[pl.ds(start, tk), :]
    acc_ref[...] += jnp.dot(lhs_ref[...], w, preferred_element_type=jnp.float32)

    @pl.when(k == pl.num_programs(1) - 1)
    def _():
        acc = acc_ref[...]
        cp = acc.shape[1]
        out_ref[...] = acc.astype(out_ref.dtype)   # bf16 raw conv output
        psum_ref[...] = jnp.broadcast_to(
            jnp.sum(acc, axis=0).reshape(1, 1, cp), (1, 8, cp))
        psq_ref[...] = jnp.broadcast_to(
            jnp.sum(acc * acc, axis=0).reshape(1, 1, cp), (1, 8, cp))


def _bn_relu_kernel(x_ref, sc_ref, sh_ref, o_ref):
    # fused BN affine + ReLU; bf16 in (raw conv), bf16 out (feeds next conv)
    y = x_ref[...] * sc_ref[...] + sh_ref[...]
    o_ref[...] = jnp.maximum(y, 0.0).astype(o_ref.dtype)


def _bn_add_bn_relu_kernel(x_ref, sc_ref, sh_ref, r_ref, rsc_ref, rsh_ref, o_ref):
    # fused BN affine (main) + BN affine (projection shortcut) + add + ReLU
    y = (x_ref[...] * sc_ref[...] + sh_ref[...]
         + r_ref[...] * rsc_ref[...] + rsh_ref[...])
    o_ref[...] = jnp.maximum(y, 0.0).astype(o_ref.dtype)


def _bn_add_id_relu_kernel(x_ref, sc_ref, sh_ref, r_ref, o_ref):
    # fused BN affine (main) + identity shortcut add + ReLU
    y = x_ref[...] * sc_ref[...] + sh_ref[...] + r_ref[...]
    o_ref[...] = jnp.maximum(y, 0.0).astype(o_ref.dtype)


# --------------------------- pallas_call wrappers ----------------------------

def conv_matmul_stats(lhs, w, tm):
    """lhs: (Mp, K) bf16, w: (K, cp) bf16 ->
       (raw bf16 (Mp, cp), per-tile channel sums (mt, 8, cp) f32, sumsq f32)."""
    mp, k = lhs.shape
    cp = w.shape[1]
    tk = _pick_k_tile(k, cp)
    mt, kt = mp // tm, k // tk
    if _weight_resident(k, cp):
        # Whole weight resident: constant block index -> DMA'd once, not mt times.
        w_spec = pl.BlockSpec((k, cp), lambda i, kk: (0, 0))
    else:
        w_spec = pl.BlockSpec((tk, cp), lambda i, kk: (kk, 0))
    return pl.pallas_call(
        _conv_mm_stats_kernel,
        out_shape=(jax.ShapeDtypeStruct((mp, cp), jnp.bfloat16),
                   jax.ShapeDtypeStruct((mt, 8, cp), jnp.float32),
                   jax.ShapeDtypeStruct((mt, 8, cp), jnp.float32)),
        grid=(mt, kt),
        in_specs=[pl.BlockSpec((tm, tk), lambda i, kk: (i, kk)), w_spec],
        out_specs=(pl.BlockSpec((tm, cp), lambda i, kk: (i, 0)),
                   pl.BlockSpec((1, 8, cp), lambda i, kk: (i, 0, 0)),
                   pl.BlockSpec((1, 8, cp), lambda i, kk: (i, 0, 0))),
        scratch_shapes=[pltpu.VMEM((tm, cp), jnp.float32)],
        compiler_params=pltpu.CompilerParams(
            dimension_semantics=("parallel", "arbitrary"),
            vmem_limit_bytes=_MM_VMEM_LIMIT),
    )(lhs, w)
    # TODO(synk): v7x-only fp8 (e4m3) operands would ~2x MXU rate once the
    # kernel is MXU-bound; gated by generation and left out here.


def bn_relu(x, scale, shift, tr):
    mp, cp = x.shape
    return pl.pallas_call(
        _bn_relu_kernel,
        out_shape=jax.ShapeDtypeStruct((mp, cp), jnp.bfloat16),
        grid=(mp // tr,),
        in_specs=[pl.BlockSpec((tr, cp), lambda i: (i, 0)),
                  pl.BlockSpec((1, cp), lambda i: (0, 0)),
                  pl.BlockSpec((1, cp), lambda i: (0, 0))],
        out_specs=pl.BlockSpec((tr, cp), lambda i: (i, 0)),
        compiler_params=pltpu.CompilerParams(
            dimension_semantics=("parallel",),
            vmem_limit_bytes=_EPI_VMEM_LIMIT),
    )(x, scale, shift)


def bn_add_bn_relu(x, scale, shift, res, rscale, rshift, tr):
    mp, cp = x.shape
    return pl.pallas_call(
        _bn_add_bn_relu_kernel,
        out_shape=jax.ShapeDtypeStruct((mp, cp), jnp.float32),
        grid=(mp // tr,),
        in_specs=[pl.BlockSpec((tr, cp), lambda i: (i, 0)),
                  pl.BlockSpec((1, cp), lambda i: (0, 0)),
                  pl.BlockSpec((1, cp), lambda i: (0, 0)),
                  pl.BlockSpec((tr, cp), lambda i: (i, 0)),
                  pl.BlockSpec((1, cp), lambda i: (0, 0)),
                  pl.BlockSpec((1, cp), lambda i: (0, 0))],
        out_specs=pl.BlockSpec((tr, cp), lambda i: (i, 0)),
        compiler_params=pltpu.CompilerParams(
            dimension_semantics=("parallel",),
            vmem_limit_bytes=_EPI_VMEM_LIMIT),
    )(x, scale, shift, res, rscale, rshift)


def bn_add_id_relu(x, scale, shift, res, tr):
    mp, cp = x.shape
    return pl.pallas_call(
        _bn_add_id_relu_kernel,
        out_shape=jax.ShapeDtypeStruct((mp, cp), jnp.float32),
        grid=(mp // tr,),
        in_specs=[pl.BlockSpec((tr, cp), lambda i: (i, 0)),
                  pl.BlockSpec((1, cp), lambda i: (0, 0)),
                  pl.BlockSpec((1, cp), lambda i: (0, 0)),
                  pl.BlockSpec((tr, cp), lambda i: (i, 0))],
        out_specs=pl.BlockSpec((tr, cp), lambda i: (i, 0)),
        compiler_params=pltpu.CompilerParams(
            dimension_semantics=("parallel",),
            vmem_limit_bytes=_EPI_VMEM_LIMIT),
    )(x, scale, shift, res)


# ------------------------------- glue (JAX) ----------------------------------

def _im2col_3d(x, stride):
    """x: (N, D, H, W, C) bf16 -> patches (N*Do*Ho*Wo, 27*C) bf16. k=3, pad=1."""
    N, D, H, W, C = x.shape
    Do = (D + 2 - 3) // stride + 1
    Ho = (H + 2 - 3) // stride + 1
    Wo = (W + 2 - 3) // stride + 1
    xp = jnp.pad(x, ((0, 0), (1, 1), (1, 1), (1, 1), (0, 0)))
    cols = []
    for kd in range(3):
        for kh in range(3):
            for kw in range(3):
                cols.append(
                    xp[:,
                       kd:kd + (Do - 1) * stride + 1:stride,
                       kh:kh + (Ho - 1) * stride + 1:stride,
                       kw:kw + (Wo - 1) * stride + 1:stride, :])
    patches = jnp.stack(cols, axis=4)               # (N, Do, Ho, Wo, 27, C)
    return patches.reshape(N * Do * Ho * Wo, 27 * C), (N, Do, Ho, Wo)
    # TODO(synk): fold the 27 taps into the conv kernel via halo'd activation
    # blocks (pl.ANY + make_async_copy, in-kernel tap accumulation) so this
    # patch matrix is never materialized in HBM (~27x activation-read
    # reduction, flipping the conv from HBM-bound to MXU-bound).  It is built
    # here in bf16 (half the previous f32 traffic) by XLA for robustness.


def _pad_rows_k_bf16(p, mp, kp):
    """Cast to bf16, then zero-pad rows to mp and contraction dim to kp."""
    p = p.astype(jnp.bfloat16)
    m, k = p.shape
    if (m, k) != (mp, kp):
        p = jnp.pad(p, ((0, mp - m), (0, kp - k)))
    return p


def _prep_conv3_w(w, kpad, cp):
    """(Cout, Cin, 3, 3, 3) -> bf16 (kpad, cp): tap-major rows, lane-padded cols."""
    cout, cin = w.shape[0], w.shape[1]
    wm = jnp.transpose(w, (2, 3, 4, 1, 0)).reshape(27 * cin, cout)
    wm = jnp.pad(wm, ((0, kpad - 27 * cin), (0, cp - cout)))
    return wm.astype(jnp.bfloat16)


def _bn_scale_shift(psum, psq, m_rows, gamma, beta, c_real, cp):
    """Training-mode BatchNorm affine (scale, shift) from per-tile sums.

    m_rows is the TRUE (unpadded) row count; zero-padded rows contribute zero
    to the sums so statistics stay unbiased.  Padded lanes get scale=shift=0
    so they stay exactly zero through the whole pipeline.
    """
    s = jnp.sum(psum[:, 0, :c_real], axis=0)
    q = jnp.sum(psq[:, 0, :c_real], axis=0)
    mean = s / m_rows
    var = jnp.maximum(q / m_rows - mean * mean, 0.0)   # biased batch variance
    scale = gamma / jnp.sqrt(var + _EPS)
    shift = beta - mean * scale
    scale = jnp.pad(scale, (0, cp - c_real))
    shift = jnp.pad(shift, (0, cp - c_real))
    return scale.reshape(1, cp), shift.reshape(1, cp)
    # TODO(synk): running_mean/running_var buffer updates (training-time side
    # effect) are not modeled; they do not affect the forward output.


def residual_block_forward(x, params, stride):
    """x: (N, Cin, D, H, W) float32 -> (N, Cout, Do, Ho, Wo) float32."""
    N, Cin, D, H, W = x.shape
    Cout = params['w1'].shape[0]
    cp = _round_up(Cout, LANE)
    use_proj = (stride != 1 or Cin != Cout)

    # NCDHW -> NDHWC, cast once to bf16 (im2col / residual stream in bf16).
    # TODO(synk): if the surrounding model is channels-last, these boundary
    # transposes (full HBM read+write each) can be dropped entirely.
    xlb = jnp.transpose(x, (0, 2, 3, 4, 1)).astype(jnp.bfloat16)

    # ---- plan one shared row tile / padded row count for the whole block ----
    Do = (D + 2 - 3) // stride + 1
    Ho = (H + 2 - 3) // stride + 1
    Wo = (W + 2 - 3) // stride + 1
    M = N * Do * Ho * Wo
    k1 = _round_up(27 * Cin, LANE)
    k2 = _round_up(27 * Cout, LANE)
    ks = _round_up(Cin, LANE)
    per_row, fixed = 0, 0
    for K in ([k1, k2, ks] if use_proj else [k1, k2]):
        tk = _pick_k_tile(K, cp)
        # double-buffered bf16 LHS tile + f32 accumulator + double-buffered bf16 out
        per_row = max(per_row, 2 * tk * 2 + cp * 4 + 2 * cp * 2)
        w_bytes = 2 * K * cp * 2 if _weight_resident(K, cp) else 2 * tk * cp * 2
        fixed = max(fixed, w_bytes)
    tm = _pick_row_tile(M, per_row, _MM_VMEM_BUDGET - fixed - (1 << 20))
    Mp = _round_up(M, tm)
    te = _pick_epi_tile(tm, cp)

    # ---- conv1 (3x3x3, stride, pad=1) -> bn1 -> relu  (bias cancelled by BN) ----
    p1, (n, Do, Ho, Wo) = _im2col_3d(xlb, stride)
    out1_raw, s1, q1 = conv_matmul_stats(
        _pad_rows_k_bf16(p1, Mp, k1), _prep_conv3_w(params['w1'], k1, cp), tm)
    sc1, sh1 = _bn_scale_shift(s1, q1, M, params['g1'], params['be1'], Cout, cp)
    out1 = bn_relu(out1_raw, sc1, sh1, te)            # (Mp, cp) bf16

    # ---- conv2 (3x3x3, stride=1, pad=1) -> bn2 ----
    p2, _ = _im2col_3d(out1[:M, :Cout].reshape(n, Do, Ho, Wo, Cout), 1)
    out2_raw, s2, q2 = conv_matmul_stats(
        _pad_rows_k_bf16(p2, Mp, k2), _prep_conv3_w(params['w2'], k2, cp), tm)
    sc2, sh2 = _bn_scale_shift(s2, q2, M, params['g2'], params['be2'], Cout, cp)

    # ---- shortcut (1x1x1 conv + bn, or identity), fused with bn2 + add + relu ----
    if use_proj:
        xs = xlb[:, ::stride, ::stride, ::stride, :].reshape(-1, Cin)
        wsm = jnp.pad(params['ws'].reshape(Cout, Cin).T,
                      ((0, ks - Cin), (0, cp - Cout))).astype(jnp.bfloat16)
        sc_raw, ss, qs = conv_matmul_stats(_pad_rows_k_bf16(xs, Mp, ks), wsm, tm)
        scs, shs = _bn_scale_shift(ss, qs, M, params['gs'], params['bes'],
                                   Cout, cp)
        out = bn_add_bn_relu(out2_raw, sc2, sh2, sc_raw, scs, shs, te)
    else:
        # identity residual streamed in bf16 (half the previous f32 traffic)
        r = jnp.pad(xlb.reshape(-1, Cin), ((0, Mp - M), (0, cp - Cin)))
        out = bn_add_id_relu(out2_raw, sc2, sh2, r, te)

    out = out[:M, :Cout].reshape(n, Do, Ho, Wo, Cout)  # drop row/lane padding
    return jnp.transpose(out, (0, 4, 1, 2, 3))


# ---------------------------- pure-JAX reference -----------------------------

def _ref_conv3d(x, w, b, stride, pad):
    y = jax.lax.conv_general_dilated(
        x, w, window_strides=(stride, stride, stride),
        padding=[(pad, pad)] * 3,
        dimension_numbers=('NCDHW', 'OIDHW', 'NCDHW'))
    return y + b.reshape(1, -1, 1, 1, 1)


def _ref_bn(y, g, be, eps=_EPS):
    mean = jnp.mean(y, axis=(0, 2, 3, 4), keepdims=True)
    var = jnp.mean((y - mean) ** 2, axis=(0, 2, 3, 4), keepdims=True)
    return (g.reshape(1, -1, 1, 1, 1) * (y - mean) / jnp.sqrt(var + eps)
            + be.reshape(1, -1, 1, 1, 1))


def ref_forward(x, params, stride):
    Cin = x.shape[1]
    Cout = params['w1'].shape[0]
    out = jax.nn.relu(_ref_bn(_ref_conv3d(x, params['w1'], params['b1'], stride, 1),
                              params['g1'], params['be1']))
    out = _ref_bn(_ref_conv3d(out, params['w2'], params['b2'], 1, 1),
                  params['g2'], params['be2'])
    if stride != 1 or Cin != Cout:
        sc = _ref_bn(_ref_conv3d(x, params['ws'], params['bs'], stride, 0),
                     params['gs'], params['bes'])
    else:
        sc = x
    return jax.nn.relu(out + sc)


# ------------------------------------ main -----------------------------------

def _make_params(key, cin, cout):
    ks = jax.random.split(key, 6)
    return {
        'w1': 0.1 * jax.random.normal(ks[0], (cout, cin, 3, 3, 3), jnp.float32),
        'b1': 0.1 * jax.random.normal(ks[1], (cout,), jnp.float32),
        'g1': jnp.ones((cout,), jnp.float32),
        'be1': jnp.zeros((cout,), jnp.float32),
        'w2': 0.1 * jax.random.normal(ks[2], (cout, cout, 3, 3, 3), jnp.float32),
        'b2': 0.1 * jax.random.normal(ks[3], (cout,), jnp.float32),
        'g2': jnp.ones((cout,), jnp.float32),
        'be2': jnp.zeros((cout,), jnp.float32),
        'ws': 0.1 * jax.random.normal(ks[4], (cout, cin, 1, 1, 1), jnp.float32),
        'bs': 0.1 * jax.random.normal(ks[5], (cout,), jnp.float32),
        'gs': jnp.ones((cout,), jnp.float32),
        'bes': jnp.zeros((cout,), jnp.float32),
    }


if __name__ == "__main__":
    fwd = jax.jit(residual_block_forward, static_argnums=2)

    key = jax.random.PRNGKey(0)
    configs = [
        # (N, Cin, Cout, D, H, W, stride)
        (2, 4, 8, 8, 8, 8, 2),   # projection-shortcut path
        (2, 8, 8, 8, 8, 8, 1),   # identity-shortcut path
    ]
    for (N, Cin, Cout, D, H, W, stride) in configs:
        key, kp, kx = jax.random.split(key, 3)
        params = _make_params(kp, Cin, Cout)
        x = jax.random.normal(kx, (N, Cin, D, H, W), jnp.float32)

        out = jax.block_until_ready(fwd(x, params, stride))
        Do = (D + 2 - 3) // stride + 1
        Ho = (H + 2 - 3) // stride + 1
        Wo = (W + 2 - 3) // stride + 1
        assert out.shape == (N, Cout, Do, Ho, Wo)

        ref = jax.block_until_ready(ref_forward(x, params, stride))
        # bf16 MXU operands / bf16 raw-output storage (f32 accumulation and
        # f32 BN statistics) vs f32 reference: outputs are BN-normalized
        # (O(1)), so a small absolute tolerance is appropriate.
        err = float(jnp.max(jnp.abs(out - ref)))
        assert err < 1e-1, f"max abs err {err} vs f32 reference"

    print("KERNEL_OK")
</pallas_src>

<mosaic_0001>
module attributes {stable_mosaic.version = 11 : i64} {
  func.func @_bn_relu_kernel(%arg0: i32, %arg1: memref<64x128xbf16, #tpu.memory_space<vmem>>, %arg2: memref<1x128xf32, #tpu.memory_space<vmem>>, %arg3: memref<1x128xf32, #tpu.memory_space<vmem>>, %arg4: memref<64x128xbf16, #tpu.memory_space<vmem>>) attributes {dimension_semantics = [#tpu.dimension_semantics<parallel>], iteration_bounds = array<i64: 2>, scalar_prefetch = 0 : i64, scratch_operands = 0 : i64, tpu.core_type = #tpu.core_type<tc>, window_params = [{transform_indices = @transform_0, window_bounds = array<i64: 64, 128>}, {pipeline_mode = #tpu.pipeline_mode<synchronous>, transform_indices = @transform_1, window_bounds = array<i64: 1, 128>}, {pipeline_mode = #tpu.pipeline_mode<synchronous>, transform_indices = @transform_2, window_bounds = array<i64: 1, 128>}, {transform_indices = @transform_3, window_bounds = array<i64: 64, 128>}]} {
    %c0 = arith.constant 0 : index
    %c0_0 = arith.constant 0 : index
    %0 = vector.load %arg1[%c0, %c0_0] : memref<64x128xbf16, #tpu.memory_space<vmem>>, vector<64x128xbf16>
    %c0_1 = arith.constant 0 : index
    %c0_2 = arith.constant 0 : index
    %1 = vector.load %arg2[%c0_1, %c0_2] : memref<1x128xf32, #tpu.memory_space<vmem>>, vector<1x128xf32>
    %2 = arith.extf %0 : vector<64x128xbf16> to vector<64x128xf32>
    %3 = vector.broadcast %1 : vector<1x128xf32> to vector<64x128xf32>
    %4 = arith.mulf %2, %3 : vector<64x128xf32>
    %c0_3 = arith.constant 0 : index
    %c0_4 = arith.constant 0 : index
    %5 = vector.load %arg3[%c0_3, %c0_4] : memref<1x128xf32, #tpu.memory_space<vmem>>, vector<1x128xf32>
    %6 = vector.broadcast %5 : vector<1x128xf32> to vector<64x128xf32>
    %7 = arith.addf %4, %6 : vector<64x128xf32>
    %cst = arith.constant 0.000000e+00 : f32
    %8 = vector.broadcast %cst : f32 to vector<64x128xf32>
    %9 = arith.maximumf %7, %8 : vector<64x128xf32>
    %10 = arith.truncf %9 : vector<64x128xf32> to vector<64x128xbf16>
    %c0_5 = arith.constant 0 : index
    %c0_6 = arith.constant 0 : index
    %11 = vector.load %arg4[%c0_5, %c0_6] : memref<64x128xbf16, #tpu.memory_space<vmem>>, vector<64x128xbf16>
    tpu.vector_store %arg4[%c0_5, %c0_6], %10 {strides = array<i32>} : memref<64x128xbf16, #tpu.memory_space<vmem>>, vector<64x128xbf16>,
    return
  }
  func.func @transform_0(%arg0: i32) -> (i32, i32) {
    %c0_i32 = arith.constant 0 : i32
    %c0_i32_0 = arith.constant 0 : i32
    return %arg0, %c0_i32 : i32, i32
  }
  func.func @transform_1(%arg0: i32) -> (i32, i32) {
    %c0_i32 = arith.constant 0 : i32
    %c0_i32_0 = arith.constant 0 : i32
    %c0_i32_1 = arith.constant 0 : i32
    return %c0_i32, %c0_i32_0 : i32, i32
  }
  func.func @transform_2(%arg0: i32) -> (i32, i32) {
    %c0_i32 = arith.constant 0 : i32
    %c0_i32_0 = arith.constant 0 : i32
    %c0_i32_1 = arith.constant 0 : i32
    return %c0_i32, %c0_i32_0 : i32, i32
  }
  func.func @transform_3(%arg0: i32) -> (i32, i32) {
    %c0_i32 = arith.constant 0 : i32
    %c0_i32_0 = arith.constant 0 : i32
    return %arg0, %c0_i32 : i32, i32
  }
}

module attributes {stable_mosaic.version = 11 : i64} {
  func.func @_conv_mm_stats_kernel(%arg0: i32, %arg1: i32, %arg2: memref<64x128xbf16, #tpu.memory_space<vmem>>, %arg3: memref<128x128xbf16, #tpu.memory_space<vmem>>, %arg4: memref<64x128xbf16, #tpu.memory_space<vmem>>, %arg5: memref<1x8x128xf32, #tpu.memory_space<vmem>>, %arg6: memref<1x8x128xf32, #tpu.memory_space<vmem>>, %arg7: memref<64x128xf32, #tpu.memory_space<vmem>>) attributes {dimension_semantics = [#tpu.dimension_semantics<parallel>, #tpu.dimension_semantics<arbitrary>], iteration_bounds = array<i64: 2, 1>, scalar_prefetch = 0 : i64, scratch_operands = 1 : i64, tpu.core_type = #tpu.core_type<tc>, window_params = [{transform_indices = @transform_0, window_bounds = array<i64: 64, 128>}, {pipeline_mode = #tpu.pipeline_mode<synchronous>, transform_indices = @transform_1, window_bounds = array<i64: 128, 128>}, {transform_indices = @transform_2, window_bounds = array<i64: 64, 128>}, {transform_indices = @transform_3, window_bounds = array<i64: 1, 8, 128>}, {transform_indices = @transform_4, window_bounds = array<i64: 1, 8, 128>}]} {
    %c0_i32 = arith.constant 0 : i32
    %0 = arith.cmpi eq, %arg1, %c0_i32 : i32
    %1 = arith.extui %0 : i1 to i32
    %c0_i32_0 = arith.constant 0 : i32
    %2 = arith.cmpi ne, %1, %c0_i32_0 : i32
    scf.if %2 {
      %cst_10 = arith.constant 0.000000e+00 : f32
      %12 = vector.broadcast %cst_10 : f32 to vector<64x128xf32>
      %c0_11 = arith.constant 0 : index
      %c0_12 = arith.constant 0 : index
      %13 = vector.load %arg7[%c0_11, %c0_12] : memref<64x128xf32, #tpu.memory_space<vmem>>, vector<64x128xf32>
      tpu.vector_store %arg7[%c0_11, %c0_12], %12 {strides = array<i32>} : memref<64x128xf32, #tpu.memory_space<vmem>>, vector<64x128xf32>,
    } else {
    }
    %c0 = arith.constant 0 : index
    %c0_1 = arith.constant 0 : index
    %3 = vector.load %arg3[%c0, %c0_1] : memref<128x128xbf16, #tpu.memory_space<vmem>>, vector<128x128xbf16>
    %c0_2 = arith.constant 0 : index
    %c0_3 = arith.constant 0 : index
    %4 = vector.load %arg7[%c0_2, %c0_3] : memref<64x128xf32, #tpu.memory_space<vmem>>, vector<64x128xf32>
    %c0_4 = arith.constant 0 : index
    %c0_5 = arith.constant 0 : index
    %5 = vector.load %arg2[%c0_4, %c0_5] : memref<64x128xbf16, #tpu.memory_space<vmem>>, vector<64x128xbf16>
    %cst = arith.constant dense<0.000000e+00> : vector<64x128xf32>
    %6 = tpu.matmul %5, %3, %cst {dimension_numbers = #tpu.dot_dimension_numbers<[1], [0], [0], [1], [0, 0, 1, 1], [], []>} : vector<64x128xbf16>, vector<128x128xbf16>, vector<64x128xf32> -> vector<64x128xf32>
    %7 = arith.addf %4, %6 : vector<64x128xf32>
    %c0_6 = arith.constant 0 : index
    %c0_7 = arith.constant 0 : index
    %8 = vector.load %arg7[%c0_6, %c0_7] : memref<64x128xf32, #tpu.memory_space<vmem>>, vector<64x128xf32>
    tpu.vector_store %arg7[%c0_6, %c0_7], %7 {strides = array<i32>} : memref<64x128xf32, #tpu.memory_space<vmem>>, vector<64x128xf32>,
    %c0_i32_8 = arith.constant 0 : i32
    %9 = arith.cmpi eq, %arg1, %c0_i32_8 : i32
    %10 = arith.extui %9 : i1 to i32
    %c0_i32_9 = arith.constant 0 : i32
    %11 = arith.cmpi ne, %10, %c0_i32_9 : i32
    scf.if %11 {
      %c0_10 = arith.constant 0 : index
      %c0_11 = arith.constant 0 : index
      %12 = vector.load %arg7[%c0_10, %c0_11] : memref<64x128xf32, #tpu.memory_space<vmem>>, vector<64x128xf32>
      %13 = arith.truncf %12 : vector<64x128xf32> to vector<64x128xbf16>
      %c0_12 = arith.constant 0 : index
      %c0_13 = arith.constant 0 : index
      %14 = vector.load %arg4[%c0_12, %c0_13] : memref<64x128xbf16, #tpu.memory_space<vmem>>, vector<64x128xbf16>
      tpu.vector_store %arg4[%c0_12, %c0_13], %13 {strides = array<i32>} : memref<64x128xbf16, #tpu.memory_space<vmem>>, vector<64x128xbf16>,
      %cst_14 = arith.constant dense<0.000000e+00> : vector<128xf32>
      %15 = vector.multi_reduction <add>, %12, %cst_14 [0] : vector<64x128xf32> to vector<128xf32>
      %16 = vector.shape_cast %15 : vector<128xf32> to vector<1x1x128xf32>
      %17 = vector.shape_cast %16 : vector<1x1x128xf32> to vector<1x1x128xf32>
      %18 = vector.broadcast %17 : vector<1x1x128xf32> to vector<1x8x128xf32>
      %c0_15 = arith.constant 0 : index
      %c0_16 = arith.constant 0 : index
      %c0_17 = arith.constant 0 : index
      %19 = vector.load %arg5[%c0_15, %c0_16, %c0_17] : memref<1x8x128xf32, #tpu.memory_space<vmem>>, vector<1x8x128xf32>
      tpu.vector_store %arg5[%c0_15, %c0_16, %c0_17], %18 {strides = array<i32>} : memref<1x8x128xf32, #tpu.memory_space<vmem>>, vector<1x8x128xf32>,
      %20 = arith.mulf %12, %12 : vector<64x128xf32>
      %cst_18 = arith.constant dense<0.000000e+00> : vector<128xf32>
      %21 = vector.multi_reduction <add>, %20, %cst_18 [0] : vector<64x128xf32> to vector<128xf32>
      %22 = vector.shape_cast %21 : vector<128xf32> to vector<1x1x128xf32>
      %23 = vector.shape_cast %22 : vector<1x1x128xf32> to vector<1x1x128xf32>
      %24 = vector.broadcast %23 : vector<1x1x128xf32> to vector<1x8x128xf32>
      %c0_19 = arith.constant 0 : index
      %c0_20 = arith.constant 0 : index
      %c0_21 = arith.constant 0 : index
      %25 = vector.load %arg6[%c0_19, %c0_20, %c0_21] : memref<1x8x128xf32, #tpu.memory_space<vmem>>, vector<1x8x128xf32>
      tpu.vector_store %arg6[%c0_19, %c0_20, %c0_21], %24 {strides = array<i32>} : memref<1x8x128xf32, #tpu.memory_space<vmem>>, vector<1x8x128xf32>,
    } else {
    }
    return
  }
  func.func @transform_0(%arg0: i32, %arg1: i32) -> (i32, i32) {
    %c0_i32 = arith.constant 0 : i32
    return %arg0, %arg1 : i32, i32
  }
  func.func @transform_1(%arg0: i32, %arg1: i32) -> (i32, i32) {
    %c0_i32 = arith.constant 0 : i32
    %c0_i32_0 = arith.constant 0 : i32
    %c0_i32_1 = arith.constant 0 : i32
    return %c0_i32, %c0_i32_0 : i32, i32
  }
  func.func @transform_2(%arg0: i32, %arg1: i32) -> (i32, i32) {
    %c0_i32 = arith.constant 0 : i32
    %c0_i32_0 = arith.constant 0 : i32
    return %arg0, %c0_i32 : i32, i32
  }
  func.func @transform_3(%arg0: i32, %arg1: i32) -> (i32, i32, i32) {
    %c0_i32 = arith.constant 0 : i32
    %c0_i32_0 = arith.constant 0 : i32
    %c0_i32_1 = arith.constant 0 : i32
    return %arg0, %c0_i32, %c0_i32_0 : i32, i32, i32
  }
  func.func @transform_4(%arg0: i32, %arg1: i32) -> (i32, i32, i32) {
    %c0_i32 = arith.constant 0 : i32
    %c0_i32_0 = arith.constant 0 : i32
    %c0_i32_1 = arith.constant 0 : i32
    return %arg0, %c0_i32, %c0_i32_0 : i32, i32, i32
  }
}

module attributes {stable_mosaic.version = 11 : i64} {
  func.func @_conv_mm_stats_kernel(%arg0: i32, %arg1: i32, %arg2: memref<64x256xbf16, #tpu.memory_space<vmem>>, %arg3: memref<256x128xbf16, #tpu.memory_space<vmem>>, %arg4: memref<64x128xbf16, #tpu.memory_space<vmem>>, %arg5: memref<1x8x128xf32, #tpu.memory_space<vmem>>, %arg6: memref<1x8x128xf32, #tpu.memory_space<vmem>>, %arg7: memref<64x128xf32, #tpu.memory_space<vmem>>) attributes {dimension_semantics = [#tpu.dimension_semantics<parallel>, #tpu.dimension_semantics<arbitrary>], iteration_bounds = array<i64: 2, 1>, scalar_prefetch = 0 : i64, scratch_operands = 1 : i64, tpu.core_type = #tpu.core_type<tc>, window_params = [{transform_indices = @transform_0, window_bounds = array<i64: 64, 256>}, {pipeline_mode = #tpu.pipeline_mode<synchronous>, transform_indices = @transform_1, window_bounds = array<i64: 256, 128>}, {transform_indices = @transform_2, window_bounds = array<i64: 64, 128>}, {transform_indices = @transform_3, window_bounds = array<i64: 1, 8, 128>}, {transform_indices = @transform_4, window_bounds = array<i64: 1, 8, 128>}]} {
    %c0_i32 = arith.constant 0 : i32
    %0 = arith.cmpi eq, %arg1, %c0_i32 : i32
    %1 = arith.extui %0 : i1 to i32
    %c0_i32_0 = arith.constant 0 : i32
    %2 = arith.cmpi ne, %1, %c0_i32_0 : i32
    scf.if %2 {
      %cst_10 = arith.constant 0.000000e+00 : f32
      %12 = vector.broadcast %cst_10 : f32 to vector<64x128xf32>
      %c0_11 = arith.constant 0 : index
      %c0_12 = arith.constant 0 : index
      %13 = vector.load %arg7[%c0_11, %c0_12] : memref<64x128xf32, #tpu.memory_space<vmem>>, vector<64x128xf32>
      tpu.vector_store %arg7[%c0_11, %c0_12], %12 {strides = array<i32>} : memref<64x128xf32, #tpu.memory_space<vmem>>, vector<64x128xf32>,
    } else {
    }
    %c0 = arith.constant 0 : index
    %c0_1 = arith.constant 0 : index
    %3 = vector.load %arg3[%c0, %c0_1] : memref<256x128xbf16, #tpu.memory_space<vmem>>, vector<256x128xbf16>
    %c0_2 = arith.constant 0 : index
    %c0_3 = arith.constant 0 : index
    %4 = vector.load %arg7[%c0_2, %c0_3] : memref<64x128xf32, #tpu.memory_space<vmem>>, vector<64x128xf32>
    %c0_4 = arith.constant 0 : index
    %c0_5 = arith.constant 0 : index
    %5 = vector.load %arg2[%c0_4, %c0_5] : memref<64x256xbf16, #tpu.memory_space<vmem>>, vector<64x256xbf16>
    %cst = arith.constant dense<0.000000e+00> : vector<64x128xf32>
    %6 = tpu.matmul %5, %3, %cst {dimension_numbers = #tpu.dot_dimension_numbers<[1], [0], [0], [1], [0, 0, 1, 1], [], []>} : vector<64x256xbf16>, vector<256x128xbf16>, vector<64x128xf32> -> vector<64x128xf32>
    %7 = arith.addf %4, %6 : vector<64x128xf32>
    %c0_6 = arith.constant 0 : index
    %c0_7 = arith.constant 0 : index
    %8 = vector.load %arg7[%c0_6, %c0_7] : memref<64x128xf32, #tpu.memory_space<vmem>>, vector<64x128xf32>
    tpu.vector_store %arg7[%c0_6, %c0_7], %7 {strides = array<i32>} : memref<64x128xf32, #tpu.memory_space<vmem>>, vector<64x128xf32>,
    %c0_i32_8 = arith.constant 0 : i32
    %9 = arith.cmpi eq, %arg1, %c0_i32_8 : i32
    %10 = arith.extui %9 : i1 to i32
    %c0_i32_9 = arith.constant 0 : i32
    %11 = arith.cmpi ne, %10, %c0_i32_9 : i32
    scf.if %11 {
      %c0_10 = arith.constant 0 : index
      %c0_11 = arith.constant 0 : index
      %12 = vector.load %arg7[%c0_10, %c0_11] : memref<64x128xf32, #tpu.memory_space<vmem>>, vector<64x128xf32>
      %13 = arith.truncf %12 : vector<64x128xf32> to vector<64x128xbf16>
      %c0_12 = arith.constant 0 : index
      %c0_13 = arith.constant 0 : index
      %14 = vector.load %arg4[%c0_12, %c0_13] : memref<64x128xbf16, #tpu.memory_space<vmem>>, vector<64x128xbf16>
      tpu.vector_store %arg4[%c0_12, %c0_13], %13 {strides = array<i32>} : memref<64x128xbf16, #tpu.memory_space<vmem>>, vector<64x128xbf16>,
      %cst_14 = arith.constant dense<0.000000e+00> : vector<128xf32>
      %15 = vector.multi_reduction <add>, %12, %cst_14 [0] : vector<64x128xf32> to vector<128xf32>
      %16 = vector.shape_cast %15 : vector<128xf32> to vector<1x1x128xf32>
      %17 = vector.shape_cast %16 : vector<1x1x128xf32> to vector<1x1x128xf32>
      %18 = vector.broadcast %17 : vector<1x1x128xf32> to vector<1x8x128xf32>
      %c0_15 = arith.constant 0 : index
      %c0_16 = arith.constant 0 : index
      %c0_17 = arith.constant 0 : index
      %19 = vector.load %arg5[%c0_15, %c0_16, %c0_17] : memref<1x8x128xf32, #tpu.memory_space<vmem>>, vector<1x8x128xf32>
      tpu.vector_store %arg5[%c0_15, %c0_16, %c0_17], %18 {strides = array<i32>} : memref<1x8x128xf32, #tpu.memory_space<vmem>>, vector<1x8x128xf32>,
      %20 = arith.mulf %12, %12 : vector<64x128xf32>
      %cst_18 = arith.constant dense<0.000000e+00> : vector<128xf32>
      %21 = vector.multi_reduction <add>, %20, %cst_18 [0] : vector<64x128xf32> to vector<128xf32>
      %22 = vector.shape_cast %21 : vector<128xf32> to vector<1x1x128xf32>
      %23 = vector.shape_cast %22 : vector<1x1x128xf32> to vector<1x1x128xf32>
      %24 = vector.broadcast %23 : vector<1x1x128xf32> to vector<1x8x128xf32>
      %c0_19 = arith.constant 0 : index
      %c0_20 = arith.constant 0 : index
      %c0_21 = arith.constant 0 : index
      %25 = vector.load %arg6[%c0_19, %c0_20, %c0_21] : memref<1x8x128xf32, #tpu.memory_space<vmem>>, vector<1x8x128xf32>
      tpu.vector_store %arg6[%c0_19, %c0_20, %c0_21], %24 {strides = array<i32>} : memref<1x8x128xf32, #tpu.memory_space<vmem>>, vector<1x8x128xf32>,
    } else {
    }
    return
  }
  func.func @transform_0(%arg0: i32, %arg1: i32) -> (i32, i32) {
    %c0_i32 = arith.constant 0 : i32
    return %arg0, %arg1 : i32, i32
  }
  func.func @transform_1(%arg0: i32, %arg1: i32) -> (i32, i32) {
    %c0_i32 = arith.constant 0 : i32
    %c0_i32_0 = arith.constant 0 : i32
    %c0_i32_1 = arith.constant 0 : i32
    return %c0_i32, %c0_i32_0 : i32, i32
  }
  func.func @transform_2(%arg0: i32, %arg1: i32) -> (i32, i32) {
    %c0_i32 = arith.constant 0 : i32
    %c0_i32_0 = arith.constant 0 : i32
    return %arg0, %c0_i32 : i32, i32
  }
  func.func @transform_3(%arg0: i32, %arg1: i32) -> (i32, i32, i32) {
    %c0_i32 = arith.constant 0 : i32
    %c0_i32_0 = arith.constant 0 : i32
    %c0_i32_1 = arith.constant 0 : i32
    return %arg0, %c0_i32, %c0_i32_0 : i32, i32, i32
  }
  func.func @transform_4(%arg0: i32, %arg1: i32) -> (i32, i32, i32) {
    %c0_i32 = arith.constant 0 : i32
    %c0_i32_0 = arith.constant 0 : i32
    %c0_i32_1 = arith.constant 0 : i32
    return %arg0, %c0_i32, %c0_i32_0 : i32, i32, i32
  }
}

module attributes {stable_mosaic.version = 11 : i64} {
  func.func @_bn_add_bn_relu_kernel(%arg0: i32, %arg1: memref<64x128xbf16, #tpu.memory_space<vmem>>, %arg2: memref<1x128xf32, #tpu.memory_space<vmem>>, %arg3: memref<1x128xf32, #tpu.memory_space<vmem>>, %arg4: memref<64x128xbf16, #tpu.memory_space<vmem>>, %arg5: memref<1x128xf32, #tpu.memory_space<vmem>>, %arg6: memref<1x128xf32, #tpu.memory_space<vmem>>, %arg7: memref<64x128xf32, #tpu.memory_space<vmem>>) attributes {dimension_semantics = [#tpu.dimension_semantics<parallel>], iteration_bounds = array<i64: 2>, scalar_prefetch = 0 : i64, scratch_operands = 0 : i64, tpu.core_type = #tpu.core_type<tc>, window_params = [{transform_indices = @transform_0, window_bounds = array<i64: 64, 128>}, {pipeline_mode = #tpu.pipeline_mode<synchronous>, transform_indices = @transform_1, window_bounds = array<i64: 1, 128>}, {pipeline_mode = #tpu.pipeline_mode<synchronous>, transform_indices = @transform_2, window_bounds = array<i64: 1, 128>}, {transform_indices = @transform_3, window_bounds = array<i64: 64, 128>}, {pipeline_mode = #tpu.pipeline_mode<synchronous>, transform_indices = @transform_4, window_bounds = array<i64: 1, 128>}, {pipeline_mode = #tpu.pipeline_mode<synchronous>, transform_indices = @transform_5, window_bounds = array<i64: 1, 128>}, {transform_indices = @transform_6, window_bounds = array<i64: 64, 128>}]} {
    %c0 = arith.constant 0 : index
    %c0_0 = arith.constant 0 : index
    %0 = vector.load %arg1[%c0, %c0_0] : memref<64x128xbf16, #tpu.memory_space<vmem>>, vector<64x128xbf16>
    %c0_1 = arith.constant 0 : index
    %c0_2 = arith.constant 0 : index
    %1 = vector.load %arg2[%c0_1, %c0_2] : memref<1x128xf32, #tpu.memory_space<vmem>>, vector<1x128xf32>
    %2 = arith.extf %0 : vector<64x128xbf16> to vector<64x128xf32>
    %3 = vector.broadcast %1 : vector<1x128xf32> to vector<64x128xf32>
    %4 = arith.mulf %2, %3 : vector<64x128xf32>
    %c0_3 = arith.constant 0 : index
    %c0_4 = arith.constant 0 : index
    %5 = vector.load %arg3[%c0_3, %c0_4] : memref<1x128xf32, #tpu.memory_space<vmem>>, vector<1x128xf32>
    %6 = vector.broadcast %5 : vector<1x128xf32> to vector<64x128xf32>
    %7 = arith.addf %4, %6 : vector<64x128xf32>
    %c0_5 = arith.constant 0 : index
    %c0_6 = arith.constant 0 : index
    %8 = vector.load %arg4[%c0_5, %c0_6] : memref<64x128xbf16, #tpu.memory_space<vmem>>, vector<64x128xbf16>
    %c0_7 = arith.constant 0 : index
    %c0_8 = arith.constant 0 : index
    %9 = vector.load %arg5[%c0_7, %c0_8] : memref<1x128xf32, #tpu.memory_space<vmem>>, vector<1x128xf32>
    %10 = arith.extf %8 : vector<64x128xbf16> to vector<64x128xf32>
    %11 = vector.broadcast %9 : vector<1x128xf32> to vector<64x128xf32>
    %12 = arith.mulf %10, %11 : vector<64x128xf32>
    %13 = arith.addf %7, %12 : vector<64x128xf32>
    %c0_9 = arith.constant 0 : index
    %c0_10 = arith.constant 0 : index
    %14 = vector.load %arg6[%c0_9, %c0_10] : memref<1x128xf32, #tpu.memory_space<vmem>>, vector<1x128xf32>
    %15 = vector.broadcast %14 : vector<1x128xf32> to vector<64x128xf32>
    %16 = arith.addf %13, %15 : vector<64x128xf32>
    %cst = arith.constant 0.000000e+00 : f32
    %17 = vector.broadcast %cst : f32 to vector<64x128xf32>
    %18 = arith.maximumf %16, %17 : vector<64x128xf32>
    %c0_11 = arith.constant 0 : index
    %c0_12 = arith.constant 0 : index
    %19 = vector.load %arg7[%c0_11, %c0_12] : memref<64x128xf32, #tpu.memory_space<vmem>>, vector<64x128xf32>
    tpu.vector_store %arg7[%c0_11, %c0_12], %18 {strides = array<i32>} : memref<64x128xf32, #tpu.memory_space<vmem>>, vector<64x128xf32>,
    return
  }
  func.func @transform_0(%arg0: i32) -> (i32, i32) {
    %c0_i32 = arith.constant 0 : i32
    %c0_i32_0 = arith.constant 0 : i32
    return %arg0, %c0_i32 : i32, i32
  }
  func.func @transform_1(%arg0: i32) -> (i32, i32) {
    %c0_i32 = arith.constant 0 : i32
    %c0_i32_0 = arith.constant 0 : i32
    %c0_i32_1 = arith.constant 0 : i32
    return %c0_i32, %c0_i32_0 : i32, i32
  }
  func.func @transform_2(%arg0: i32) -> (i32, i32) {
    %c0_i32 = arith.constant 0 : i32
    %c0_i32_0 = arith.constant 0 : i32
    %c0_i32_1 = arith.constant 0 : i32
    return %c0_i32, %c0_i32_0 : i32, i32
  }
  func.func @transform_3(%arg0: i32) -> (i32, i32) {
    %c0_i32 = arith.constant 0 : i32
    %c0_i32_0 = arith.constant 0 : i32
    return %arg0, %c0_i32 : i32, i32
  }
  func.func @transform_4(%arg0: i32) -> (i32, i32) {
    %c0_i32 = arith.constant 0 : i32
    %c0_i32_0 = arith.constant 0 : i32
    %c0_i32_1 = arith.constant 0 : i32
    return %c0_i32, %c0_i32_0 : i32, i32
  }
  func.func @transform_5(%arg0: i32) -> (i32, i32) {
    %c0_i32 = arith.constant 0 : i32
    %c0_i32_0 = arith.constant 0 : i32
    %c0_i32_1 = arith.constant 0 : i32
    return %c0_i32, %c0_i32_0 : i32, i32
  }
  func.func @transform_6(%arg0: i32) -> (i32, i32) {
    %c0_i32 = arith.constant 0 : i32
    %c0_i32_0 = arith.constant 0 : i32
    return %arg0, %c0_i32 : i32, i32
  }
}

</mosaic_0001>

<llo_original>
// kernel: residual_block_forward.6
$region0: #{residual_block_forward.6}
  #allocation0 [shape = 'u32[]', space=smem, size = 0x4, offset = 0x4, fixed_abs, tag = 'smem constant byte address 0x4 - core index']
  #allocation1 [shape = 'u32[144,128]{1,0:T(1,128)}', space=vmem, size = 0x12000, scoped, tag = 'internal scratch']
  %s0 = inlined_call_operand.vmem [shape: bf16[128,128], index: 0, kind: input, shape index: {}]
  %s1 = inlined_call_operand.vmem [shape: f32[1,128], index: 1, kind: input, shape index: {}]
  %s2 = inlined_call_operand.vmem [shape: f32[1,128], index: 2, kind: input, shape index: {}]
  %s3 = inlined_call_operand.vmem [shape: bf16[128,128], index: 3, kind: output, shape index: {}]
  %s4 = sld [smem:[#allocation0]]
  $region45: #{residual_block_forward.6} parent=0
    _
  %s6 = ssub.s32 1, %s4
  %s7 = scalar_select 0, %s6, %s4
  loop: start=0, step=1, limit=4
  $region2: #{residual_block_forward.6} parent=0 // loop_pre_header
    _
  $region3: #{residual_block_forward.6} parent=0 // loop_header
    %s9 = sphi 0, %s13
    %p10 = scmp.ge.s32.totalorder %s9, 4
    %s19 = sphi 0, %s21
    %s22 = sphi 0, %s19
    %s23 = sphi 0, %s22
    %s39 = sphi 0, %s23
    %s43 = sphi 0, %s43
    %s45 = sphi 0, %s43
    %s46 = sphi 0, %s45
    %s60 = sphi 0, %s46
    %s64 = sphi 0, %s64
    %s66 = sphi 0, %s64
    %s67 = sphi 0, %s66
    %s81 = sphi 0, %s67
    %s87 = sphi 0, %s89
    %s90 = sphi 0, %s87
    %s91 = sphi 0, %s90
    %s107 = sphi 0, %s91
  $region4: #{residual_block_forward.6} parent=0 // loop_header_branch
    %12 = sbr.rel (%p10) target = $region8
  $region5: #{residual_block_forward.6} parent=0 // loop_body
    %s14 = ssub.s32 %s9, 1
    %s15 = ssub.s32 %s9, 2
    %s16 = sadd.s32 %s9, 1
    %s17 = ssub.s32 %s9, %s16
    %p18 = scmp.eq.s32.totalorder %s17, 0
    %s20 = sadd.s32 %s19, 1
    %s21 = scalar_select %p18, %s19, %s20
    %p24 = pneg %p18
    %p25 = scmp.eq.s32.totalorder %s9, 1
    %p26 = por %p24, %p25
    %p27 = scmp.ne.s32.totalorder %s19, %s22
    %p28 = scmp.eq.s32.totalorder %s9, 0
    %p29 = por %p27, %p28
    %p30 = scmp.ne.s32.totalorder %s19, %s22
    %p31 = scmp.eq.s32.totalorder %s14, 1
    %p32 = por %p30, %p31
    %p33 = scmp.ne.s32.totalorder %s22, %s23
    %p34 = scmp.eq.s32.totalorder %s14, 0
    %p35 = por %p33, %p34
    %p36 = scmp.ne.s32.totalorder %s22, %s23
    %p37 = scmp.eq.s32.totalorder %s15, 1
    %p38 = por %p36, %p37
    %p40 = scmp.ne.s32.totalorder %s23, %s39
    %p41 = scmp.eq.s32.totalorder %s15, 0
    %p42 = por %p40, %p41
    %s44 = sadd.s32 %s43, 1
    %p47 = scmp.eq.s32.totalorder %s9, 1
    %p48 = scmp.ne.s32.totalorder %s43, %s45
    %p49 = scmp.eq.s32.totalorder %s9, 0
    %p50 = por %p48, %p49
    %p51 = scmp.ne.s32.totalorder %s43, %s45
    %p52 = scmp.eq.s32.totalorder %s14, 1
    %p53 = por %p51, %p52
    %p54 = scmp.ne.s32.totalorder %s45, %s46
    %p55 = scmp.eq.s32.totalorder %s14, 0
    %p56 = por %p54, %p55
    %p57 = scmp.ne.s32.totalorder %s45, %s46
    %p58 = scmp.eq.s32.totalorder %s15, 1
    %p59 = por %p57, %p58
    %p61 = scmp.ne.s32.totalorder %s46, %s60
    %p62 = scmp.eq.s32.totalorder %s15, 0
    %p63 = por %p61, %p62
    %s65 = sadd.s32 %s64, 1
    %p68 = scmp.eq.s32.totalorder %s9, 1
    %p69 = scmp.ne.s32.totalorder %s64, %s66
    %p70 = scmp.eq.s32.totalorder %s9, 0
    %p71 = por %p69, %p70
    %p72 = scmp.ne.s32.totalorder %s64, %s66
    %p73 = scmp.eq.s32.totalorder %s14, 1
    %p74 = por %p72, %p73
    %p75 = scmp.ne.s32.totalorder %s66, %s67
    %p76 = scmp.eq.s32.totalorder %s14, 0
    %p77 = por %p75, %p76
    %p78 = scmp.ne.s32.totalorder %s66, %s67
    %p79 = scmp.eq.s32.totalorder %s15, 1
    %p80 = por %p78, %p79
    %p82 = scmp.ne.s32.totalorder %s67, %s81
    %p83 = scmp.eq.s32.totalorder %s15, 0
    %p84 = por %p82, %p83
    %s85 = ssub.s32 %s9, %s16
    %p86 = scmp.eq.s32.totalorder %s85, 0
    %s88 = sadd.s32 %s87, 1
    %s89 = scalar_select %p86, %s87, %s88
    %p92 = pneg %p86
    %p93 = scmp.eq.s32.totalorder %s9, 1
    %p94 = por %p92, %p93
    %p95 = scmp.ne.s32.totalorder %s87, %s90
    %p96 = scmp.eq.s32.totalorder %s9, 0
    %p97 = por %p95, %p96
    %p98 = scmp.ne.s32.totalorder %s87, %s90
    %p99 = scmp.eq.s32.totalorder %s14, 1
    %p100 = por %p98, %p99
    %p101 = scmp.ne.s32.totalorder %s90, %s91
    %p102 = scmp.eq.s32.totalorder %s14, 0
    %p103 = por %p101, %p102
    %p104 = scmp.ne.s32.totalorder %s90, %s91
    %p105 = scmp.eq.s32.totalorder %s15, 1
    %p106 = por %p104, %p105
    %p108 = scmp.ne.s32.totalorder %s91, %s107
    %p109 = scmp.eq.s32.totalorder %s15, 0
    %p110 = por %p108, %p109
    %p111 = scmp.le.s32.totalorder 1, %s9
    %p112 = scmp.lt.s32.totalorder %s9, 3
    %p113 = pnand %p111, %p112
    %p114 = pneg %p113
    // Predicated region
    $region9: #{residual_block_forward.6} parent=5 // pred_check
      _
    $region10: #{residual_block_forward.6} parent=5 // pred_check_branch
      %116 = sbr.rel (%p113) target = $region12
    $region11: #{residual_block_forward.6} parent=5 // pred_region
      %s117 = ssub.s32 %s9, 1
      // Predicated region
      $region13: #{residual_block_forward.6} parent=11 // pred_check
        %p118 = pneg %p56
      $region14: #{residual_block_forward.6} parent=11 // pred_check_branch
        %120 = sbr.rel (%p118) target = $region16
      $region15: #{residual_block_forward.6} parent=11 // pred_region
        _
      $region16: #{residual_block_forward.6} parent=11 // pred_fallthru
        _
      // Predicated region
      $region17: #{residual_block_forward.6} parent=11 // pred_check
        %p121 = pneg %p77
      $region18: #{residual_block_forward.6} parent=11 // pred_check_branch
        %123 = sbr.rel (%p121) target = $region20
      $region19: #{residual_block_forward.6} parent=11 // pred_region
        _
      $region20: #{residual_block_forward.6} parent=11 // pred_fallthru
        _
    $region12: #{residual_block_forward.6} parent=5 // pred_fallthru
      _
    %p124 = scmp.lt.s32.totalorder %s9, 2
    // Predicated region
    $region21: #{residual_block_forward.6} parent=5 // pred_check
      %p125 = pneg %p124
    $region22: #{residual_block_forward.6} parent=5 // pred_check_branch
      %127 = sbr.rel (%p125) target = $region24
    $region23: #{residual_block_forward.6} parent=5 // pred_region
      // Predicated region
      $region25: #{residual_block_forward.6} parent=23 // pred_check
        %p128 = pneg %p29
      $region26: #{residual_block_forward.6} parent=23 // pred_check_branch
        %130 = sbr.rel (%p128) target = $region28
      $region27: #{residual_block_forward.6} parent=23 // pred_region
        %s131 = smul.u32 8, %s9
        %p132 = scmp.lt.s32.totalorder %s131, 15
        %s133 = scalar_select %p132, %s131, 15
        %s134 = smul.addr %s133, 4
        %s135 = scalar_lea.vmem %s0, %s134
        %s136 = smul.u32 8, %s9
      $region28: #{residual_block_forward.6} parent=23 // pred_fallthru
        _
    $region24: #{residual_block_forward.6} parent=5 // pred_fallthru
      _
    %p137 = scmp.le.s32.totalorder 1, %s9
    %p138 = scmp.lt.s32.totalorder %s9, 3
    %p139 = pnand %p137, %p138
    %p140 = pneg %p139
    // Predicated region
    $region29: #{residual_block_forward.6} parent=5 // pred_check
      _
    $region30: #{residual_block_forward.6} parent=5 // pred_check_branch
      %142 = sbr.rel (%p139) target = $region32
    $region31: #{residual_block_forward.6} parent=5 // pred_region
      %s143 = ssub.s32 %s9, 1
      %s144 = smul.u32 8, %s14
      %p145 = scmp.lt.s32.totalorder %s144, 15
      %s146 = scalar_select %p145, %s144, 15
      %s147 = smul.addr %s146, 4
      %s148 = scalar_lea.vmem %s0, %s147
      %p149 = pneg %p35
      %p150 = pneg %p32
      %p151 = pneg %p56
      %p152 = pneg %p53
      %p153 = pneg %p77
      %p154 = pneg %p74
      %p155 = pneg %p103
      %p156 = pneg %p100
      %s157 = smul.u32 8, %s14
      %p158 = scmp.lt.s32.totalorder %s157, 15
      %s159 = scalar_select %p158, %s157, 15
      %s160 = smul.addr %s159, 4
      %s161 = scalar_lea.vmem %s3, %s160
      %s162 = smul.u32 8, %s14
      %p163 = scmp.lt.s32.totalorder %s162, 15
      %s164 = scalar_select %p163, %s162, 15
      %s165 = smul.addr %s164, 4
      %s166 = scalar_lea.vmem %s0, %s165
      %s167 = smul.u32 8, %s14
      %s168 = smul.u32 8, %s14
      %p169 = scmp.lt.s32.totalorder %s168, 15
      %s170 = scalar_select %p169, %s168, 15
      %s171 = smul.addr %s170, 4
      %s172 = scalar_lea.vmem %s3, %s171
      %s173 = smul.u32 8, %s14
      %v174 = vld [vmem:[%s166] sm:$0xf]
      %v175 = vld [vmem:[%s166 + $0x4] sm:$0xf]
      %v176 = vld [vmem:[%s166 + $0x8] sm:$0xf]
      %v177 = vld [vmem:[%s166 + $0xc] sm:$0xf]
      %v178 = vld [vmem:[%s166 + $0x10] sm:$0xf]
      %v179 = vld [vmem:[%s166 + $0x14] sm:$0xf]
      %v180 = vld [vmem:[%s166 + $0x18] sm:$0xf]
      %v181 = vld [vmem:[%s166 + $0x1c] sm:$0xf]
      %v182 = vld [vmem:[%s1] sm:$0x1]
      %v183 = vunpack.c.l.bf16 %v174
      %v184 = vunpack.c.l.bf16 %v175
      %v185 = vunpack.c.l.bf16 %v176
      %v186 = vunpack.c.l.bf16 %v177
      %v187 = vunpack.c.l.bf16 %v178
      %v188 = vunpack.c.l.bf16 %v179
      %v189 = vunpack.c.l.bf16 %v180
      %v190 = vunpack.c.l.bf16 %v181
      %v192 = vlaneseq
      %v193 = vshrl.u32 %v192, 7
      %v194 = vsub.s32 0, %v193
      %v195 = vrot.slane %v182, %v194
      %v197 = vmul.f32 %v183, %v195
      %v198 = vmul.f32 %v184, %v195
      %v199 = vmul.f32 %v185, %v195
      %v200 = vmul.f32 %v186, %v195
      %v201 = vmul.f32 %v187, %v195
      %v202 = vmul.f32 %v188, %v195
      %v203 = vmul.f32 %v189, %v195
      %v204 = vmul.f32 %v190, %v195
      %v205 = vld [vmem:[%s2] sm:$0x1]
      %v207 = vlaneseq
      %v208 = vshrl.u32 %v207, 7
      %v209 = vsub.s32 0, %v208
      %v210 = vrot.slane %v205, %v209
      %v212 = vadd.f32 %v197, %v210
      %v213 = vadd.f32 %v198, %v210
      %v214 = vadd.f32 %v199, %v210
      %v215 = vadd.f32 %v200, %v210
      %v216 = vadd.f32 %v201, %v210
      %v217 = vadd.f32 %v202, %v210
      %v218 = vadd.f32 %v203, %v210
      %v219 = vadd.f32 %v204, %v210
      %v220 = vmax.f32 %v212, 0.0
      %v221 = vmax.f32 %v213, 0.0
      %v222 = vmax.f32 %v214, 0.0
      %v223 = vmax.f32 %v215, 0.0
      %v224 = vmax.f32 %v216, 0.0
      %v225 = vmax.f32 %v217, 0.0
      %v226 = vmax.f32 %v218, 0.0
      %v227 = vmax.f32 %v219, 0.0
      %v228 = vpack.c.bf16 %v221, %v220
      %v229 = vpack.c.bf16 %v223, %v222
      %v230 = vpack.c.bf16 %v225, %v224
      %v231 = vpack.c.bf16 %v227, %v226
      %v236 = vunpack.c.l.b16 %v228
      %v237 = vunpack.c.h.b16 %v228
      %v238 = vunpack.c.l.b16 %v229
      %v239 = vunpack.c.h.b16 %v229
      %v240 = vunpack.c.l.b16 %v230
      %v241 = vunpack.c.h.b16 %v230
      %v242 = vunpack.c.l.b16 %v231
      %v243 = vunpack.c.h.b16 %v231
      %v244 = vpack.c.b16 %v236, %v236
      %v245 = vpack.c.b16 %v237, %v237
      %v246 = vpack.c.b16 %v238, %v238
      %v247 = vpack.c.b16 %v239, %v239
      %v248 = vpack.c.b16 %v240, %v240
      %v249 = vpack.c.b16 %v241, %v241
      %v250 = vpack.c.b16 %v242, %v242
      %v251 = vpack.c.b16 %v243, %v243
      %260 = vst [vmem:[%s172] sm:$0xf] %v244
      %261 = vst [vmem:[%s172 + $0x4] sm:$0xf] %v245
      %262 = vst [vmem:[%s172 + $0x8] sm:$0xf] %v246
      %263 = vst [vmem:[%s172 + $0xc] sm:$0xf] %v247
      %264 = vst [vmem:[%s172 + $0x10] sm:$0xf] %v248
      %265 = vst [vmem:[%s172 + $0x14] sm:$0xf] %v249
      %266 = vst [vmem:[%s172 + $0x18] sm:$0xf] %v250
      %267 = vst [vmem:[%s172 + $0x1c] sm:$0xf] %v251
      %s268 = smul.u32 8, %s14
      %p269 = scmp.lt.s32.totalorder %s268, 15
      %s270 = scalar_select %p269, %s268, 15
      %s271 = smul.addr %s270, 4
      %s272 = scalar_lea.vmem %s3, %s271
      // Predicated region
      $region33: #{residual_block_forward.6} parent=31 // pred_check
        %p273 = pneg %p100
      $region34: #{residual_block_forward.6} parent=31 // pred_check_branch
        %275 = sbr.rel (%p273) target = $region36
      $region35: #{residual_block_forward.6} parent=31 // pred_region
        %s276 = smul.u32 8, %s14
      $region36: #{residual_block_forward.6} parent=31 // pred_fallthru
        _
    $region32: #{residual_block_forward.6} parent=5 // pred_fallthru
      _
    %p277 = scmp.le.s32.totalorder 2, %s9
    // Predicated region
    $region37: #{residual_block_forward.6} parent=5 // pred_check
      %p278 = pneg %p277
    $region38: #{residual_block_forward.6} parent=5 // pred_check_branch
      %280 = sbr.rel (%p278) target = $region40
    $region39: #{residual_block_forward.6} parent=5 // pred_region
      %s281 = ssub.s32 %s9, 2
      // Predicated region
      $region41: #{residual_block_forward.6} parent=39 // pred_check
        %p282 = pneg %p106
      $region42: #{residual_block_forward.6} parent=39 // pred_check_branch
        %284 = sbr.rel (%p282) target = $region44
      $region43: #{residual_block_forward.6} parent=39 // pred_region
        %s285 = smul.u32 8, %s15
        %p286 = scmp.lt.s32.totalorder %s285, 15
        %s287 = scalar_select %p286, %s285, 15
        %s288 = smul.addr %s287, 4
        %s289 = scalar_lea.vmem %s3, %s288
      $region44: #{residual_block_forward.6} parent=39 // pred_fallthru
        _
    $region40: #{residual_block_forward.6} parent=5 // pred_fallthru
      _
  $region6: #{residual_block_forward.6} parent=0 // loop_footer
    %s13 = sadd.s32 1, %s9
  $region7: #{residual_block_forward.6} parent=0 // loop_footer_branch
    %8 = sbr.rel target = $region3
  $region8: #{residual_block_forward.6} parent=0 // loop_exit
    _

// kernel: residual_block_forward.5
$region0: #{residual_block_forward.5}
  #allocation0 [shape = 'u32[]', space=smem, size = 0x4, offset = 0x4, fixed_abs, tag = 'smem constant byte address 0x4 - core index']
  #allocation1 [shape = 'u32[144,128]{1,0:T(1,128)}', space=vmem, size = 0x12000, scoped, tag = 'internal scratch']
  #allocation2 [shape = 'f32[64,128]{1,0:T(8,128)}', space=vmem, size = 0x8000, scoped, tag = 'scratch operand']
  %s0 = inlined_call_operand.vmem [shape: bf16[128,128], index: 0, kind: input, shape index: {}]
  %s1 = inlined_call_operand.vmem [shape: bf16[128,128], index: 1, kind: input, shape index: {}]
  %s2 = inlined_call_operand.vmem [shape: bf16[128,128], index: 2, kind: output, shape index: {0}]
  %s3 = inlined_call_operand.vmem [shape: f32[2,8,128], index: 3, kind: output, shape index: {1}]
  %s4 = inlined_call_operand.vmem [shape: f32[2,8,128], index: 4, kind: output, shape index: {2}]
  %5 = xla_tuple %s2, %s3, %s4
  %s6 = sld [smem:[#allocation0]]
  $region65: #{residual_block_forward.5} parent=0
    _
  %s8 = ssub.s32 1, %s6
  %s9 = scalar_select 0, %s8, %s6
  loop: start=0, step=1, limit=4
  $region2: #{residual_block_forward.5} parent=0 // loop_pre_header
    _
  $region3: #{residual_block_forward.5} parent=0 // loop_header
    %s11 = sphi 0, %s15
    %p12 = scmp.ge.s32.totalorder %s11, 4
    %s18 = sphi 0, %s30
    %s19 = sphi 0, %s26
    %s20 = sphi 0, %s18
    %s21 = sphi 0, %s19
    %s22 = sphi 0, %s20
    %s23 = sphi 0, %s21
    %s35 = sphi 0, %s37
    %s38 = sphi 0, %s35
    %s39 = sphi 0, %s38
    %s55 = sphi 0, %s39
    %s59 = sphi 0, %s59
    %s61 = sphi 0, %s59
    %s62 = sphi 0, %s61
    %s76 = sphi 0, %s62
    %s82 = sphi 0, %s84
    %s85 = sphi 0, %s82
    %s86 = sphi 0, %s85
    %s102 = sphi 0, %s86
    %s108 = sphi 0, %s110
    %s111 = sphi 0, %s108
    %s112 = sphi 0, %s111
    %s128 = sphi 0, %s112
    %s134 = sphi 0, %s136
    %s137 = sphi 0, %s134
    %s138 = sphi 0, %s137
    %s154 = sphi 0, %s138
  $region4: #{residual_block_forward.5} parent=0 // loop_header_branch
    %14 = sbr.rel (%p12) target = $region8
  $region5: #{residual_block_forward.5} parent=0 // loop_body
    %s16 = ssub.s32 %s11, 1
    %s17 = ssub.s32 %s11, 2
    %s24 = sadd.s32 1, %s19
    %p25 = scmp.ge.s32.totalorder %s24, 1
    %s26 = scalar_select %p25, 0, %s24
    %s27 = sadd.s32 1, %s18
    %s28 = scalar_select %p25, %s27, %s18
    %p29 = scmp.ge.s32.totalorder %s28, 2
    %s30 = scalar_select %p29, 0, %s28
    %s31 = ssub.s32 %s18, %s30
    %s32 = ssub.s32 %s19, %s26
    %s33 = sor.u32 %s31, %s32
    %p34 = scmp.eq.s32.totalorder %s33, 0
    %s36 = sadd.s32 %s35, 1
    %s37 = scalar_select %p34, %s35, %s36
    %p40 = pneg %p34
    %p41 = scmp.eq.s32.totalorder %s11, 1
    %p42 = por %p40, %p41
    %p43 = scmp.ne.s32.totalorder %s35, %s38
    %p44 = scmp.eq.s32.totalorder %s11, 0
    %p45 = por %p43, %p44
    %p46 = scmp.ne.s32.totalorder %s35, %s38
    %p47 = scmp.eq.s32.totalorder %s16, 1
    %p48 = por %p46, %p47
    %p49 = scmp.ne.s32.totalorder %s38, %s39
    %p50 = scmp.eq.s32.totalorder %s16, 0
    %p51 = por %p49, %p50
    %p52 = scmp.ne.s32.totalorder %s38, %s39
    %p53 = scmp.eq.s32.totalorder %s17, 1
    %p54 = por %p52, %p53
    %p56 = scmp.ne.s32.totalorder %s39, %s55
    %p57 = scmp.eq.s32.totalorder %s17, 0
    %p58 = por %p56, %p57
    %s60 = sadd.s32 %s59, 1
    %p63 = scmp.eq.s32.totalorder %s11, 1
    %p64 = scmp.ne.s32.totalorder %s59, %s61
    %p65 = scmp.eq.s32.totalorder %s11, 0
    %p66 = por %p64, %p65
    %p67 = scmp.ne.s32.totalorder %s59, %s61
    %p68 = scmp.eq.s32.totalorder %s16, 1
    %p69 = por %p67, %p68
    %p70 = scmp.ne.s32.totalorder %s61, %s62
    %p71 = scmp.eq.s32.totalorder %s16, 0
    %p72 = por %p70, %p71
    %p73 = scmp.ne.s32.totalorder %s61, %s62
    %p74 = scmp.eq.s32.totalorder %s17, 1
    %p75 = por %p73, %p74
    %p77 = scmp.ne.s32.totalorder %s62, %s76
    %p78 = scmp.eq.s32.totalorder %s17, 0
    %p79 = por %p77, %p78
    %s80 = ssub.s32 %s18, %s30
    %p81 = scmp.eq.s32.totalorder %s80, 0
    %s83 = sadd.s32 %s82, 1
    %s84 = scalar_select %p81, %s82, %s83
    %p87 = pneg %p81
    %p88 = scmp.eq.s32.totalorder %s11, 1
    %p89 = por %p87, %p88
    %p90 = scmp.ne.s32.totalorder %s82, %s85
    %p91 = scmp.eq.s32.totalorder %s11, 0
    %p92 = por %p90, %p91
    %p93 = scmp.ne.s32.totalorder %s82, %s85
    %p94 = scmp.eq.s32.totalorder %s16, 1
    %p95 = por %p93, %p94
    %p96 = scmp.ne.s32.totalorder %s85, %s86
    %p97 = scmp.eq.s32.totalorder %s16, 0
    %p98 = por %p96, %p97
    %p99 = scmp.ne.s32.totalorder %s85, %s86
    %p100 = scmp.eq.s32.totalorder %s17, 1
    %p101 = por %p99, %p100
    %p103 = scmp.ne.s32.totalorder %s86, %s102
    %p104 = scmp.eq.s32.totalorder %s17, 0
    %p105 = por %p103, %p104
    %s106 = ssub.s32 %s18, %s30
    %p107 = scmp.eq.s32.totalorder %s106, 0
    %s109 = sadd.s32 %s108, 1
    %s110 = scalar_select %p107, %s108, %s109
    %p113 = pneg %p107
    %p114 = scmp.eq.s32.totalorder %s11, 1
    %p115 = por %p113, %p114
    %p116 = scmp.ne.s32.totalorder %s108, %s111
    %p117 = scmp.eq.s32.totalorder %s11, 0
    %p118 = por %p116, %p117
    %p119 = scmp.ne.s32.totalorder %s108, %s111
    %p120 = scmp.eq.s32.totalorder %s16, 1
    %p121 = por %p119, %p120
    %p122 = scmp.ne.s32.totalorder %s111, %s112
    %p123 = scmp.eq.s32.totalorder %s16, 0
    %p124 = por %p122, %p123
    %p125 = scmp.ne.s32.totalorder %s111, %s112
    %p126 = scmp.eq.s32.totalorder %s17, 1
    %p127 = por %p125, %p126
    %p129 = scmp.ne.s32.totalorder %s112, %s128
    %p130 = scmp.eq.s32.totalorder %s17, 0
    %p131 = por %p129, %p130
    %s132 = ssub.s32 %s18, %s30
    %p133 = scmp.eq.s32.totalorder %s132, 0
    %s135 = sadd.s32 %s134, 1
    %s136 = scalar_select %p133, %s134, %s135
    %p139 = pneg %p133
    %p140 = scmp.eq.s32.totalorder %s11, 1
    %p141 = por %p139, %p140
    %p142 = scmp.ne.s32.totalorder %s134, %s137
    %p143 = scmp.eq.s32.totalorder %s11, 0
    %p144 = por %p142, %p143
    %p145 = scmp.ne.s32.totalorder %s134, %s137
    %p146 = scmp.eq.s32.totalorder %s16, 1
    %p147 = por %p145, %p146
    %p148 = scmp.ne.s32.totalorder %s137, %s138
    %p149 = scmp.eq.s32.totalorder %s16, 0
    %p150 = por %p148, %p149
    %p151 = scmp.ne.s32.totalorder %s137, %s138
    %p152 = scmp.eq.s32.totalorder %s17, 1
    %p153 = por %p151, %p152
    %p155 = scmp.ne.s32.totalorder %s138, %s154
    %p156 = scmp.eq.s32.totalorder %s17, 0
    %p157 = por %p155, %p156
    %p158 = scmp.le.s32.totalorder 1, %s11
    %p159 = scmp.lt.s32.totalorder %s11, 3
    %p160 = pnand %p158, %p159
    %p161 = pneg %p160
    // Predicated region
    $region9: #{residual_block_forward.5} parent=5 // pred_check
      _
    $region10: #{residual_block_forward.5} parent=5 // pred_check_branch
      %163 = sbr.rel (%p160) target = $region12
    $region11: #{residual_block_forward.5} parent=5 // pred_region
      %s164 = ssub.s32 %s11, 1
      // Predicated region
      $region13: #{residual_block_forward.5} parent=11 // pred_check
        %p165 = pneg %p72
      $region14: #{residual_block_forward.5} parent=11 // pred_check_branch
        %167 = sbr.rel (%p165) target = $region16
      $region15: #{residual_block_forward.5} parent=11 // pred_region
        _
      $region16: #{residual_block_forward.5} parent=11 // pred_fallthru
        _
    $region12: #{residual_block_forward.5} parent=5 // pred_fallthru
      _
    %p168 = scmp.lt.s32.totalorder %s11, 2
    // Predicated region
    $region17: #{residual_block_forward.5} parent=5 // pred_check
      %p169 = pneg %p168
    $region18: #{residual_block_forward.5} parent=5 // pred_check_branch
      %171 = sbr.rel (%p169) target = $region20
    $region19: #{residual_block_forward.5} parent=5 // pred_region
      // Predicated region
      $region21: #{residual_block_forward.5} parent=19 // pred_check
        %p172 = pneg %p45
      $region22: #{residual_block_forward.5} parent=19 // pred_check_branch
        %174 = sbr.rel (%p172) target = $region24
      $region23: #{residual_block_forward.5} parent=19 // pred_region
        %s175 = smul.u32 8, %s18
        %p176 = scmp.lt.s32.totalorder %s175, 15
        %s177 = scalar_select %p176, %s175, 15
        %p178 = scmp.lt.s32.totalorder %s19, 0
        %s179 = scalar_select %p178, %s19, 0
        %s180 = sadd.s32 %s179, %s177
        %s181 = smul.addr %s180, 4
        %s182 = scalar_lea.vmem %s0, %s181
        %s183 = smul.u32 8, %s18
      $region24: #{residual_block_forward.5} parent=19 // pred_fallthru
        _
    $region20: #{residual_block_forward.5} parent=5 // pred_fallthru
      _
    %p184 = scmp.le.s32.totalorder 1, %s11
    %p185 = scmp.lt.s32.totalorder %s11, 3
    %p186 = pnand %p184, %p185
    %p187 = pneg %p186
    // Predicated region
    $region25: #{residual_block_forward.5} parent=5 // pred_check
      _
    $region26: #{residual_block_forward.5} parent=5 // pred_check_branch
      %189 = sbr.rel (%p186) target = $region28
    $region27: #{residual_block_forward.5} parent=5 // pred_region
      %s190 = ssub.s32 %s11, 1
      %s191 = smul.u32 8, %s20
      %p192 = scmp.lt.s32.totalorder %s191, 15
      %s193 = scalar_select %p192, %s191, 15
      %p194 = scmp.lt.s32.totalorder %s21, 0
      %s195 = scalar_select %p194, %s21, 0
      %s196 = sadd.s32 %s195, %s193
      %s197 = smul.addr %s196, 4
      %s198 = scalar_lea.vmem %s0, %s197
      %p199 = pneg %p51
      %p200 = pneg %p48
      %p201 = pneg %p72
      %p202 = pneg %p69
      %p203 = pneg %p98
      %p204 = pneg %p95
      %s205 = smul.u32 8, %s20
      %p206 = scmp.lt.s32.totalorder %s205, 15
      %s207 = scalar_select %p206, %s205, 15
      %s208 = smul.addr %s207, 4
      %s209 = scalar_lea.vmem %s2, %s208
      %p210 = pneg %p124
      %p211 = pneg %p121
      %p212 = scmp.lt.s32.totalorder %s20, 1
      %s213 = scalar_select %p212, %s20, 1
      %s214 = smul.addr %s213, 8
      %s215 = scalar_lea.vmem %s3, %s214
      %p216 = pneg %p150
      %p217 = pneg %p147
      %p218 = scmp.lt.s32.totalorder %s20, 1
      %s219 = scalar_select %p218, %s20, 1
      %s220 = smul.addr %s219, 8
      %s221 = scalar_lea.vmem %s4, %s220
      %s222 = smul.u32 8, %s20
      %p223 = scmp.lt.s32.totalorder %s222, 15
      %s224 = scalar_select %p223, %s222, 15
      %p225 = scmp.lt.s32.totalorder %s21, 0
      %s226 = scalar_select %p225, %s21, 0
      %s227 = sadd.s32 %s226, %s224
      %s228 = smul.addr %s227, 4
      %s229 = scalar_lea.vmem %s0, %s228
      %s230 = smul.u32 8, %s20
      %s231 = smul.u32 8, %s20
      %p232 = scmp.lt.s32.totalorder %s231, 15
      %s233 = scalar_select %p232, %s231, 15
      %s234 = smul.addr %s233, 4
      %s235 = scalar_lea.vmem %s2, %s234
      %s236 = smul.u32 8, %s20
      %p237 = scmp.lt.s32.totalorder %s20, 1
      %s238 = scalar_select %p237, %s20, 1
      %s239 = smul.addr %s238, 8
      %s240 = scalar_lea.vmem %s3, %s239
      %p241 = scmp.lt.s32.totalorder %s20, 1
      %s242 = scalar_select %p241, %s20, 1
      %s243 = smul.addr %s242, 8
      %s244 = scalar_lea.vmem %s4, %s243
      %p246 = scmp.eq.s32.totalorder %s21, 0
      // Predicated region
      $region29: #{residual_block_forward.5} parent=27 // pred_check
        %p247 = pneg %p246
      $region30: #{residual_block_forward.5} parent=27 // pred_check_branch
        %249 = sbr.rel (%p247) target = $region32
      $region31: #{residual_block_forward.5} parent=27 // pred_region
        %250 = vst [vmem:[#allocation2] sm:$0xff] 0.0
        %251 = vst [vmem:[#allocation2 + $0x8] sm:$0xff] 0.0
        %252 = vst [vmem:[#allocation2 + $0x10] sm:$0xff] 0.0
        %253 = vst [vmem:[#allocation2 + $0x18] sm:$0xff] 0.0
        %254 = vst [vmem:[#allocation2 + $0x20] sm:$0xff] 0.0
        %255 = vst [vmem:[#allocation2 + $0x28] sm:$0xff] 0.0
        %256 = vst [vmem:[#allocation2 + $0x30] sm:$0xff] 0.0
        %257 = vst [vmem:[#allocation2 + $0x38] sm:$0xff] 0.0
      $region32: #{residual_block_forward.5} parent=27 // pred_fallthru
        _
      %v258 = vld [vmem:[%s1] sm:$0xf]
      %v259 = vld [vmem:[%s1 + $0x4] sm:$0xf]
      %v260 = vld [vmem:[%s1 + $0x8] sm:$0xf]
      %v261 = vld [vmem:[%s1 + $0xc] sm:$0xf]
      %v262 = vld [vmem:[%s1 + $0x10] sm:$0xf]
      %v263 = vld [vmem:[%s1 + $0x14] sm:$0xf]
      %v264 = vld [vmem:[%s1 + $0x18] sm:$0xf]
      %v265 = vld [vmem:[%s1 + $0x1c] sm:$0xf]
      %v266 = vld [vmem:[%s1 + $0x20] sm:$0xf]
      %v267 = vld [vmem:[%s1 + $0x24] sm:$0xf]
      %v268 = vld [vmem:[%s1 + $0x28] sm:$0xf]
      %v269 = vld [vmem:[%s1 + $0x2c] sm:$0xf]
      %v270 = vld [vmem:[%s1 + $0x30] sm:$0xf]
      %v271 = vld [vmem:[%s1 + $0x34] sm:$0xf]
      %v272 = vld [vmem:[%s1 + $0x38] sm:$0xf]
      %v273 = vld [vmem:[%s1 + $0x3c] sm:$0xf]
      %v274 = vld [vmem:[#allocation2] sm:$0xff]
      %v275 = vld [vmem:[#allocation2 + $0x8] sm:$0xff]
      %v276 = vld [vmem:[#allocation2 + $0x10] sm:$0xff]
      %v277 = vld [vmem:[#allocation2 + $0x18] sm:$0xff]
      %v278 = vld [vmem:[#allocation2 + $0x20] sm:$0xff]
      %v279 = vld [vmem:[#allocation2 + $0x28] sm:$0xff]
      %v280 = vld [vmem:[#allocation2 + $0x30] sm:$0xff]
      %v281 = vld [vmem:[#allocation2 + $0x38] sm:$0xff]
      %v282 = vld [vmem:[%s229] sm:$0xf]
      %v283 = vld [vmem:[%s229 + $0x4] sm:$0xf]
      %v284 = vld [vmem:[%s229 + $0x8] sm:$0xf]
      %v285 = vld [vmem:[%s229 + $0xc] sm:$0xf]
      %v286 = vld [vmem:[%s229 + $0x10] sm:$0xf]
      %v287 = vld [vmem:[%s229 + $0x14] sm:$0xf]
      %v288 = vld [vmem:[%s229 + $0x18] sm:$0xf]
      %v289 = vld [vmem:[%s229 + $0x1c] sm:$0xf]
      %v298 = vunpack.c.l.b16 %v282
      %v299 = vunpack.c.l.b16 %v283
      %v300 = vunpack.c.l.b16 %v284
      %v301 = vunpack.c.l.b16 %v285
      %v302 = vunpack.c.l.b16 %v286
      %v303 = vunpack.c.l.b16 %v287
      %v304 = vunpack.c.l.b16 %v288
      %v305 = vunpack.c.l.b16 %v289
      %v306 = vpack.c.b16 %v299, %v298
      %v307 = vpack.c.b16 %v301, %v300
      %v308 = vpack.c.b16 %v303, %v302
      %v309 = vpack.c.b16 %v305, %v304
      %v330 = vunpack.c.l.b16 %v258
      %v331 = vunpack.c.l.b16 %v259
      %v332 = vunpack.c.l.b16 %v260
      %v333 = vunpack.c.l.b16 %v261
      %v334 = vunpack.c.l.b16 %v262
      %v335 = vunpack.c.l.b16 %v263
      %v336 = vunpack.c.l.b16 %v264
      %v337 = vunpack.c.l.b16 %v265
      %v338 = vunpack.c.l.b16 %v266
      %v339 = vunpack.c.l.b16 %v267
      %v340 = vunpack.c.l.b16 %v268
      %v341 = vunpack.c.l.b16 %v269
      %v342 = vunpack.c.l.b16 %v270
      %v343 = vunpack.c.l.b16 %v271
      %v344 = vunpack.c.l.b16 %v272
      %v345 = vunpack.c.l.b16 %v273
      %v346 = vpack.c.b16 %v331, %v330
      %v347 = vpack.c.b16 %v333, %v332
      %v348 = vpack.c.b16 %v335, %v334
      %v349 = vpack.c.b16 %v337, %v336
      %v350 = vpack.c.b16 %v339, %v338
      %v351 = vpack.c.b16 %v341, %v340
      %v352 = vpack.c.b16 %v343, %v342
      %v353 = vpack.c.b16 %v345, %v344
      %362 = vmatprep.subr.bf16.mxu0 0
      %363 = vmatpush1.bf16.msra.mxu0 %v346
      %364 = vmatprep.subr.bf16.mxu0 0
      %365 = vmatpush1.bf16.msra.mxu0 %v347
      %366 = vmatprep.subr.bf16.mxu0 0
      %367 = vmatpush1.bf16.msra.mxu0 %v348
      %368 = vmatprep.subr.bf16.mxu0 0
      %369 = vmatpush1.bf16.msra.mxu0 %v349
      %370 = vmatprep.subr.bf16.mxu0 0
      %371 = vmatpush1.bf16.msra.mxu0 %v350
      %372 = vmatprep.subr.bf16.mxu0 0
      %373 = vmatpush1.bf16.msra.mxu0 %v351
      %374 = vmatprep.subr.bf16.mxu0 0
      %375 = vmatpush1.bf16.msra.mxu0 %v352
      %376 = vmatprep.subr.bf16.mxu0 0
      %377 = vmatpush1.bf16.msra.mxu0 %v353
      %378 = vmatprep.subr.bf16.mxu0 0
      %379 = vmatpush1.bf16.msra.mxu0 0
      %380 = vmatprep.subr.bf16.mxu0 0
      %381 = vmatpush1.bf16.msra.mxu0 0
      %382 = vmatprep.subr.bf16.mxu0 0
      %383 = vmatpush1.bf16.msra.mxu0 0
      %384 = vmatprep.subr.bf16.mxu0 0
      %385 = vmatpush1.bf16.msra.mxu0 0
      %386 = vmatprep.subr.bf16.mxu0 0
      %387 = vmatpush1.bf16.msra.mxu0 0
      %388 = vmatprep.subr.bf16.mxu0 0
      %389 = vmatpush1.bf16.msra.mxu0 0
      %390 = vmatprep.subr.bf16.mxu0 0
      %391 = vmatpush1.bf16.msra.mxu0 0
      %392 = vmatprep.subr.bf16.mxu0 0
      %393 = vmatpush1.bf16.msra.mxu0 0
      %394 = vmatprep.mubr.bf16.mxu0 0
      %395 = vmatmul.mubr.bf16.gmra.mrb[0].mxu0 %v306
      %v396 = vpop.f32.mrb[0].mxu0
      %v397 = vadd.f32 0.0, %v396
      %v398 = vpop.f32.mrb[0].mxu0
      %v399 = vpop.f32.mrb[0].mxu0
      %v400 = vadd.f32 0.0, %v399
      %v401 = vpop.f32.mrb[0].mxu0
      %402 = vmatprep.mubr.bf16.mxu0 0
      %403 = vmatmul.mubr.bf16.gmra.mrb[0].mxu0 %v307
      %v404 = vpop.f32.mrb[0].mxu0
      %v405 = vadd.f32 0.0, %v404
      %v406 = vpop.f32.mrb[0].mxu0
      %v407 = vpop.f32.mrb[0].mxu0
      %v408 = vadd.f32 0.0, %v407
      %v409 = vpop.f32.mrb[0].mxu0
      %410 = vmatprep.mubr.bf16.mxu0 0
      %411 = vmatmul.mubr.bf16.gmra.mrb[0].mxu0 %v308
      %v412 = vpop.f32.mrb[0].mxu0
      %v413 = vadd.f32 0.0, %v412
      %v414 = vpop.f32.mrb[0].mxu0
      %v415 = vpop.f32.mrb[0].mxu0
      %v416 = vadd.f32 0.0, %v415
      %v417 = vpop.f32.mrb[0].mxu0
      %418 = vmatprep.mubr.bf16.mxu0 0
      %419 = vmatmul.mubr.bf16.gmra.mrb[0].mxu0 %v309
      %v420 = vpop.f32.mrb[0].mxu0
      %v421 = vadd.f32 0.0, %v420
      %v422 = vpop.f32.mrb[0].mxu0
      %v423 = vpop.f32.mrb[0].mxu0
      %v424 = vadd.f32 0.0, %v423
      %v425 = vpop.f32.mrb[0].mxu0
      %426 = vdwg.mxu0
      %v427 = vadd.f32 %v274, %v397
      %v428 = vadd.f32 %v275, %v400
      %v429 = vadd.f32 %v276, %v405
      %v430 = vadd.f32 %v277, %v408
      %v431 = vadd.f32 %v278, %v413
      %v432 = vadd.f32 %v279, %v416
      %v433 = vadd.f32 %v280, %v421
      %v434 = vadd.f32 %v281, %v424
      %435 = vst [vmem:[#allocation2] sm:$0xff] %v427
      %436 = vst [vmem:[#allocation2 + $0x8] sm:$0xff] %v428
      %437 = vst [vmem:[#allocation2 + $0x10] sm:$0xff] %v429
      %438 = vst [vmem:[#allocation2 + $0x18] sm:$0xff] %v430
      %439 = vst [vmem:[#allocation2 + $0x20] sm:$0xff] %v431
      %440 = vst [vmem:[#allocation2 + $0x28] sm:$0xff] %v432
      %441 = vst [vmem:[#allocation2 + $0x30] sm:$0xff] %v433
      %442 = vst [vmem:[#allocation2 + $0x38] sm:$0xff] %v434
      // Predicated region
      $region33: #{residual_block_forward.5} parent=27 // pred_check
        %p443 = pneg %p246
      $region34: #{residual_block_forward.5} parent=27 // pred_check_branch
        %445 = sbr.rel (%p443) target = $region36
      $region35: #{residual_block_forward.5} parent=27 // pred_region
        %v446 = vld [vmem:[#allocation2] sm:$0xff]
        %v447 = vld [vmem:[#allocation2 + $0x8] sm:$0xff]
        %v448 = vld [vmem:[#allocation2 + $0x10] sm:$0xff]
        %v449 = vld [vmem:[#allocation2 + $0x18] sm:$0xff]
        %v450 = vld [vmem:[#allocation2 + $0x20] sm:$0xff]
        %v451 = vld [vmem:[#allocation2 + $0x28] sm:$0xff]
        %v452 = vld [vmem:[#allocation2 + $0x30] sm:$0xff]
        %v453 = vld [vmem:[#allocation2 + $0x38] sm:$0xff]
        %v454 = vpack.c.bf16 %v447, %v446
        %v455 = vpack.c.bf16 %v449, %v448
        %v456 = vpack.c.bf16 %v451, %v450
        %v457 = vpack.c.bf16 %v453, %v452
        %v462 = vunpack.c.l.b16 %v454
        %v463 = vunpack.c.h.b16 %v454
        %v464 = vunpack.c.l.b16 %v455
        %v465 = vunpack.c.h.b16 %v455
        %v466 = vunpack.c.l.b16 %v456
        %v467 = vunpack.c.h.b16 %v456
        %v468 = vunpack.c.l.b16 %v457
        %v469 = vunpack.c.h.b16 %v457
        %v470 = vpack.c.b16 %v462, %v462
        %v471 = vpack.c.b16 %v463, %v463
        %v472 = vpack.c.b16 %v464, %v464
        %v473 = vpack.c.b16 %v465, %v465
        %v474 = vpack.c.b16 %v466, %v466
        %v475 = vpack.c.b16 %v467, %v467
        %v476 = vpack.c.b16 %v468, %v468
        %v477 = vpack.c.b16 %v469, %v469
        %486 = vst [vmem:[%s235] sm:$0xf] %v470
        %487 = vst [vmem:[%s235 + $0x4] sm:$0xf] %v471
        %488 = vst [vmem:[%s235 + $0x8] sm:$0xf] %v472
        %489 = vst [vmem:[%s235 + $0xc] sm:$0xf] %v473
        %490 = vst [vmem:[%s235 + $0x10] sm:$0xf] %v474
        %491 = vst [vmem:[%s235 + $0x14] sm:$0xf] %v475
        %492 = vst [vmem:[%s235 + $0x18] sm:$0xf] %v476
        %493 = vst [vmem:[%s235 + $0x1c] sm:$0xf] %v477
        %v494 = vadd.f32 %v446, %v447
        %v495 = vadd.f32 %v494, %v448
        %v496 = vadd.f32 %v495, %v449
        %v497 = vadd.f32 %v496, %v450
        %v498 = vadd.f32 %v497, %v451
        %v499 = vadd.f32 %v498, %v452
        %v500 = vadd.f32 %v499, %v453
        %v501 = vrot.slane %v500, 4
        %v502 = vadd.f32 %v500, %v501
        %v503 = vrot.slane %v502, 2
        %v504 = vadd.f32 %v502, %v503
        %v505 = vrot.slane %v504, 1
        %v506 = vadd.f32 %v504, %v505
        %507 = vst [vmem:[%s240] sm:$0xff] %v506
        %v508 = vmul.f32 %v446, %v446
        %v509 = vmul.f32 %v447, %v447
        %v510 = vmul.f32 %v448, %v448
        %v511 = vmul.f32 %v449, %v449
        %v512 = vmul.f32 %v450, %v450
        %v513 = vmul.f32 %v451, %v451
        %v514 = vmul.f32 %v452, %v452
        %v515 = vmul.f32 %v453, %v453
        %v516 = vadd.f32 %v508, %v509
        %v517 = vadd.f32 %v516, %v510
        %v518 = vadd.f32 %v517, %v511
        %v519 = vadd.f32 %v518, %v512
        %v520 = vadd.f32 %v519, %v513
        %v521 = vadd.f32 %v520, %v514
        %v522 = vadd.f32 %v521, %v515
        %v523 = vrot.slane %v522, 4
        %v524 = vadd.f32 %v522, %v523
        %v525 = vrot.slane %v524, 2
        %v526 = vadd.f32 %v524, %v525
        %v527 = vrot.slane %v526, 1
        %v528 = vadd.f32 %v526, %v527
        %529 = vst [vmem:[%s244] sm:$0xff] %v528
      $region36: #{residual_block_forward.5} parent=27 // pred_fallthru
        _
      %s530 = smul.u32 8, %s20
      %p531 = scmp.lt.s32.totalorder %s530, 15
      %s532 = scalar_select %p531, %s530, 15
      %s533 = smul.addr %s532, 4
      %s534 = scalar_lea.vmem %s2, %s533
      %p535 = scmp.lt.s32.totalorder %s20, 1
      %s536 = scalar_select %p535, %s20, 1
      %s537 = smul.addr %s536, 8
      %s538 = scalar_lea.vmem %s3, %s537
      %p539 = scmp.lt.s32.totalorder %s20, 1
      %s540 = scalar_select %p539, %s20, 1
      %s541 = smul.addr %s540, 8
      %s542 = scalar_lea.vmem %s4, %s541
      // Predicated region
      $region37: #{residual_block_forward.5} parent=27 // pred_check
        %p543 = pneg %p95
      $region38: #{residual_block_forward.5} parent=27 // pred_check_branch
        %545 = sbr.rel (%p543) target = $region40
      $region39: #{residual_block_forward.5} parent=27 // pred_region
        %s546 = smul.u32 8, %s20
      $region40: #{residual_block_forward.5} parent=27 // pred_fallthru
        _
      // Predicated region
      $region41: #{residual_block_forward.5} parent=27 // pred_check
        %p547 = pneg %p121
      $region42: #{residual_block_forward.5} parent=27 // pred_check_branch
        %549 = sbr.rel (%p547) target = $region44
      $region43: #{residual_block_forward.5} parent=27 // pred_region
        _
      $region44: #{residual_block_forward.5} parent=27 // pred_fallthru
        _
      // Predicated region
      $region45: #{residual_block_forward.5} parent=27 // pred_check
        %p550 = pneg %p147
      $region46: #{residual_block_forward.5} parent=27 // pred_check_branch
        %552 = sbr.rel (%p550) target = $region48
      $region47: #{residual_block_forward.5} parent=27 // pred_region
        _
      $region48: #{residual_block_forward.5} parent=27 // pred_fallthru
        _
    $region28: #{residual_block_forward.5} parent=5 // pred_fallthru
      _
    %p553 = scmp.le.s32.totalorder 2, %s11
    // Predicated region
    $region49: #{residual_block_forward.5} parent=5 // pred_check
      %p554 = pneg %p553
    $region50: #{residual_block_forward.5} parent=5 // pred_check_branch
      %556 = sbr.rel (%p554) target = $region52
    $region51: #{residual_block_forward.5} parent=5 // pred_region
      %s557 = ssub.s32 %s11, 2
      // Predicated region
      $region53: #{residual_block_forward.5} parent=51 // pred_check
        %p558 = pneg %p101
      $region54: #{residual_block_forward.5} parent=51 // pred_check_branch
        %560 = sbr.rel (%p558) target = $region56
      $region55: #{residual_block_forward.5} parent=51 // pred_region
        %s561 = smul.u32 8, %s22
        %p562 = scmp.lt.s32.totalorder %s561, 15
        %s563 = scalar_select %p562, %s561, 15
        %s564 = smul.addr %s563, 4
        %s565 = scalar_lea.vmem %s2, %s564
      $region56: #{residual_block_forward.5} parent=51 // pred_fallthru
        _
      // Predicated region
      $region57: #{residual_block_forward.5} parent=51 // pred_check
        %p566 = pneg %p127
      $region58: #{residual_block_forward.5} parent=51 // pred_check_branch
        %568 = sbr.rel (%p566) target = $region60
      $region59: #{residual_block_forward.5} parent=51 // pred_region
        %p569 = scmp.lt.s32.totalorder %s22, 1
        %s570 = scalar_select %p569, %s22, 1
        %s571 = smul.addr %s570, 8
        %s572 = scalar_lea.vmem %s3, %s571
      $region60: #{residual_block_forward.5} parent=51 // pred_fallthru
        _
      // Predicated region
      $region61: #{residual_block_forward.5} parent=51 // pred_check
        %p573 = pneg %p153
      $region62: #{residual_block_forward.5} parent=51 // pred_check_branch
        %575 = sbr.rel (%p573) target = $region64
      $region63: #{residual_block_forward.5} parent=51 // pred_region
        %p576 = scmp.lt.s32.totalorder %s22, 1
        %s577 = scalar_select %p576, %s22, 1
        %s578 = smul.addr %s577, 8
        %s579 = scalar_lea.vmem %s4, %s578
      $region64: #{residual_block_forward.5} parent=51 // pred_fallthru
        _
    $region52: #{residual_block_forward.5} parent=5 // pred_fallthru
      _
  $region6: #{residual_block_forward.5} parent=0 // loop_footer
    %s15 = sadd.s32 1, %s11
  $region7: #{residual_block_forward.5} parent=0 // loop_footer_branch
    %10 = sbr.rel target = $region3
  $region8: #{residual_block_forward.5} parent=0 // loop_exit
    _

// kernel: residual_block_forward.7
$region0: #{residual_block_forward.7}
  #allocation0 [shape = 'u32[]', space=smem, size = 0x4, offset = 0x4, fixed_abs, tag = 'smem constant byte address 0x4 - core index']
  #allocation1 [shape = 'u32[144,128]{1,0:T(1,128)}', space=vmem, size = 0x12000, scoped, tag = 'internal scratch']
  #allocation2 [shape = 'f32[64,128]{1,0:T(8,128)}', space=vmem, size = 0x8000, scoped, tag = 'scratch operand']
  %s0 = inlined_call_operand.vmem [shape: bf16[128,256], index: 0, kind: input, shape index: {}]
  %s1 = inlined_call_operand.vmem [shape: bf16[256,128], index: 1, kind: input, shape index: {}]
  %s2 = inlined_call_operand.vmem [shape: bf16[128,128], index: 2, kind: output, shape index: {0}]
  %s3 = inlined_call_operand.vmem [shape: f32[2,8,128], index: 3, kind: output, shape index: {1}]
  %s4 = inlined_call_operand.vmem [shape: f32[2,8,128], index: 4, kind: output, shape index: {2}]
  %5 = xla_tuple %s2, %s3, %s4
  %s6 = sld [smem:[#allocation0]]
  $region65: #{residual_block_forward.7} parent=0
    _
  %s8 = ssub.s32 1, %s6
  %s9 = scalar_select 0, %s8, %s6
  loop: start=0, step=1, limit=4
  $region2: #{residual_block_forward.7} parent=0 // loop_pre_header
    _
  $region3: #{residual_block_forward.7} parent=0 // loop_header
    %s11 = sphi 0, %s15
    %p12 = scmp.ge.s32.totalorder %s11, 4
    %s18 = sphi 0, %s30
    %s19 = sphi 0, %s26
    %s20 = sphi 0, %s18
    %s21 = sphi 0, %s19
    %s22 = sphi 0, %s20
    %s23 = sphi 0, %s21
    %s35 = sphi 0, %s37
    %s38 = sphi 0, %s35
    %s39 = sphi 0, %s38
    %s55 = sphi 0, %s39
    %s59 = sphi 0, %s59
    %s61 = sphi 0, %s59
    %s62 = sphi 0, %s61
    %s76 = sphi 0, %s62
    %s82 = sphi 0, %s84
    %s85 = sphi 0, %s82
    %s86 = sphi 0, %s85
    %s102 = sphi 0, %s86
    %s108 = sphi 0, %s110
    %s111 = sphi 0, %s108
    %s112 = sphi 0, %s111
    %s128 = sphi 0, %s112
    %s134 = sphi 0, %s136
    %s137 = sphi 0, %s134
    %s138 = sphi 0, %s137
    %s154 = sphi 0, %s138
  $region4: #{residual_block_forward.7} parent=0 // loop_header_branch
    %14 = sbr.rel (%p12) target = $region8
  $region5: #{residual_block_forward.7} parent=0 // loop_body
    %s16 = ssub.s32 %s11, 1
    %s17 = ssub.s32 %s11, 2
    %s24 = sadd.s32 1, %s19
    %p25 = scmp.ge.s32.totalorder %s24, 1
    %s26 = scalar_select %p25, 0, %s24
    %s27 = sadd.s32 1, %s18
    %s28 = scalar_select %p25, %s27, %s18
    %p29 = scmp.ge.s32.totalorder %s28, 2
    %s30 = scalar_select %p29, 0, %s28
    %s31 = ssub.s32 %s18, %s30
    %s32 = ssub.s32 %s19, %s26
    %s33 = sor.u32 %s31, %s32
    %p34 = scmp.eq.s32.totalorder %s33, 0
    %s36 = sadd.s32 %s35, 1
    %s37 = scalar_select %p34, %s35, %s36
    %p40 = pneg %p34
    %p41 = scmp.eq.s32.totalorder %s11, 1
    %p42 = por %p40, %p41
    %p43 = scmp.ne.s32.totalorder %s35, %s38
    %p44 = scmp.eq.s32.totalorder %s11, 0
    %p45 = por %p43, %p44
    %p46 = scmp.ne.s32.totalorder %s35, %s38
    %p47 = scmp.eq.s32.totalorder %s16, 1
    %p48 = por %p46, %p47
    %p49 = scmp.ne.s32.totalorder %s38, %s39
    %p50 = scmp.eq.s32.totalorder %s16, 0
    %p51 = por %p49, %p50
    %p52 = scmp.ne.s32.totalorder %s38, %s39
    %p53 = scmp.eq.s32.totalorder %s17, 1
    %p54 = por %p52, %p53
    %p56 = scmp.ne.s32.totalorder %s39, %s55
    %p57 = scmp.eq.s32.totalorder %s17, 0
    %p58 = por %p56, %p57
    %s60 = sadd.s32 %s59, 1
    %p63 = scmp.eq.s32.totalorder %s11, 1
    %p64 = scmp.ne.s32.totalorder %s59, %s61
    %p65 = scmp.eq.s32.totalorder %s11, 0
    %p66 = por %p64, %p65
    %p67 = scmp.ne.s32.totalorder %s59, %s61
    %p68 = scmp.eq.s32.totalorder %s16, 1
    %p69 = por %p67, %p68
    %p70 = scmp.ne.s32.totalorder %s61, %s62
    %p71 = scmp.eq.s32.totalorder %s16, 0
    %p72 = por %p70, %p71
    %p73 = scmp.ne.s32.totalorder %s61, %s62
    %p74 = scmp.eq.s32.totalorder %s17, 1
    %p75 = por %p73, %p74
    %p77 = scmp.ne.s32.totalorder %s62, %s76
    %p78 = scmp.eq.s32.totalorder %s17, 0
    %p79 = por %p77, %p78
    %s80 = ssub.s32 %s18, %s30
    %p81 = scmp.eq.s32.totalorder %s80, 0
    %s83 = sadd.s32 %s82, 1
    %s84 = scalar_select %p81, %s82, %s83
    %p87 = pneg %p81
    %p88 = scmp.eq.s32.totalorder %s11, 1
    %p89 = por %p87, %p88
    %p90 = scmp.ne.s32.totalorder %s82, %s85
    %p91 = scmp.eq.s32.totalorder %s11, 0
    %p92 = por %p90, %p91
    %p93 = scmp.ne.s32.totalorder %s82, %s85
    %p94 = scmp.eq.s32.totalorder %s16, 1
    %p95 = por %p93, %p94
    %p96 = scmp.ne.s32.totalorder %s85, %s86
    %p97 = scmp.eq.s32.totalorder %s16, 0
    %p98 = por %p96, %p97
    %p99 = scmp.ne.s32.totalorder %s85, %s86
    %p100 = scmp.eq.s32.totalorder %s17, 1
    %p101 = por %p99, %p100
    %p103 = scmp.ne.s32.totalorder %s86, %s102
    %p104 = scmp.eq.s32.totalorder %s17, 0
    %p105 = por %p103, %p104
    %s106 = ssub.s32 %s18, %s30
    %p107 = scmp.eq.s32.totalorder %s106, 0
    %s109 = sadd.s32 %s108, 1
    %s110 = scalar_select %p107, %s108, %s109
    %p113 = pneg %p107
    %p114 = scmp.eq.s32.totalorder %s11, 1
    %p115 = por %p113, %p114
    %p116 = scmp.ne.s32.totalorder %s108, %s111
    %p117 = scmp.eq.s32.totalorder %s11, 0
    %p118 = por %p116, %p117
    %p119 = scmp.ne.s32.totalorder %s108, %s111
    %p120 = scmp.eq.s32.totalorder %s16, 1
    %p121 = por %p119, %p120
    %p122 = scmp.ne.s32.totalorder %s111, %s112
    %p123 = scmp.eq.s32.totalorder %s16, 0
    %p124 = por %p122, %p123
    %p125 = scmp.ne.s32.totalorder %s111, %s112
    %p126 = scmp.eq.s32.totalorder %s17, 1
    %p127 = por %p125, %p126
    %p129 = scmp.ne.s32.totalorder %s112, %s128
    %p130 = scmp.eq.s32.totalorder %s17, 0
    %p131 = por %p129, %p130
    %s132 = ssub.s32 %s18, %s30
    %p133 = scmp.eq.s32.totalorder %s132, 0
    %s135 = sadd.s32 %s134, 1
    %s136 = scalar_select %p133, %s134, %s135
    %p139 = pneg %p133
    %p140 = scmp.eq.s32.totalorder %s11, 1
    %p141 = por %p139, %p140
    %p142 = scmp.ne.s32.totalorder %s134, %s137
    %p143 = scmp.eq.s32.totalorder %s11, 0
    %p144 = por %p142, %p143
    %p145 = scmp.ne.s32.totalorder %s134, %s137
    %p146 = scmp.eq.s32.totalorder %s16, 1
    %p147 = por %p145, %p146
    %p148 = scmp.ne.s32.totalorder %s137, %s138
    %p149 = scmp.eq.s32.totalorder %s16, 0
    %p150 = por %p148, %p149
    %p151 = scmp.ne.s32.totalorder %s137, %s138
    %p152 = scmp.eq.s32.totalorder %s17, 1
    %p153 = por %p151, %p152
    %p155 = scmp.ne.s32.totalorder %s138, %s154
    %p156 = scmp.eq.s32.totalorder %s17, 0
    %p157 = por %p155, %p156
    %p158 = scmp.le.s32.totalorder 1, %s11
    %p159 = scmp.lt.s32.totalorder %s11, 3
    %p160 = pnand %p158, %p159
    %p161 = pneg %p160
    // Predicated region
    $region9: #{residual_block_forward.7} parent=5 // pred_check
      _
    $region10: #{residual_block_forward.7} parent=5 // pred_check_branch
      %163 = sbr.rel (%p160) target = $region12
    $region11: #{residual_block_forward.7} parent=5 // pred_region
      %s164 = ssub.s32 %s11, 1
      // Predicated region
      $region13: #{residual_block_forward.7} parent=11 // pred_check
        %p165 = pneg %p72
      $region14: #{residual_block_forward.7} parent=11 // pred_check_branch
        %167 = sbr.rel (%p165) target = $region16
      $region15: #{residual_block_forward.7} parent=11 // pred_region
        _
      $region16: #{residual_block_forward.7} parent=11 // pred_fallthru
        _
    $region12: #{residual_block_forward.7} parent=5 // pred_fallthru
      _
    %p168 = scmp.lt.s32.totalorder %s11, 2
    // Predicated region
    $region17: #{residual_block_forward.7} parent=5 // pred_check
      %p169 = pneg %p168
    $region18: #{residual_block_forward.7} parent=5 // pred_check_branch
      %171 = sbr.rel (%p169) target = $region20
    $region19: #{residual_block_forward.7} parent=5 // pred_region
      // Predicated region
      $region21: #{residual_block_forward.7} parent=19 // pred_check
        %p172 = pneg %p45
      $region22: #{residual_block_forward.7} parent=19 // pred_check_branch
        %174 = sbr.rel (%p172) target = $region24
      $region23: #{residual_block_forward.7} parent=19 // pred_region
        %s175 = smul.u32 8, %s18
        %s176 = smul.u32 2, %s19
        %p177 = scmp.lt.s32.totalorder %s175, 15
        %s178 = scalar_select %p177, %s175, 15
        %p179 = scmp.lt.s32.totalorder %s176, 1
        %s180 = scalar_select %p179, %s176, 1
        %s181 = smul.addr %s178, 2
        %s182 = sadd.s32 %s180, %s181
        %s183 = smul.addr %s182, 4
        %s184 = scalar_lea.vmem %s0, %s183
        %s185 = smul.u32 8, %s18
        %s186 = smul.u32 2, %s19
      $region24: #{residual_block_forward.7} parent=19 // pred_fallthru
        _
    $region20: #{residual_block_forward.7} parent=5 // pred_fallthru
      _
    %p187 = scmp.le.s32.totalorder 1, %s11
    %p188 = scmp.lt.s32.totalorder %s11, 3
    %p189 = pnand %p187, %p188
    %p190 = pneg %p189
    // Predicated region
    $region25: #{residual_block_forward.7} parent=5 // pred_check
      _
    $region26: #{residual_block_forward.7} parent=5 // pred_check_branch
      %192 = sbr.rel (%p189) target = $region28
    $region27: #{residual_block_forward.7} parent=5 // pred_region
      %s193 = ssub.s32 %s11, 1
      %s194 = smul.u32 8, %s20
      %s195 = smul.u32 2, %s21
      %p196 = scmp.lt.s32.totalorder %s194, 15
      %s197 = scalar_select %p196, %s194, 15
      %p198 = scmp.lt.s32.totalorder %s195, 1
      %s199 = scalar_select %p198, %s195, 1
      %s200 = smul.addr %s197, 2
      %s201 = sadd.s32 %s199, %s200
      %s202 = smul.addr %s201, 4
      %s203 = scalar_lea.vmem %s0, %s202
      %p204 = pneg %p51
      %p205 = pneg %p48
      %p206 = pneg %p72
      %p207 = pneg %p69
      %p208 = pneg %p98
      %p209 = pneg %p95
      %s210 = smul.u32 8, %s20
      %p211 = scmp.lt.s32.totalorder %s210, 15
      %s212 = scalar_select %p211, %s210, 15
      %s213 = smul.addr %s212, 4
      %s214 = scalar_lea.vmem %s2, %s213
      %p215 = pneg %p124
      %p216 = pneg %p121
      %p217 = scmp.lt.s32.totalorder %s20, 1
      %s218 = scalar_select %p217, %s20, 1
      %s219 = smul.addr %s218, 8
      %s220 = scalar_lea.vmem %s3, %s219
      %p221 = pneg %p150
      %p222 = pneg %p147
      %p223 = scmp.lt.s32.totalorder %s20, 1
      %s224 = scalar_select %p223, %s20, 1
      %s225 = smul.addr %s224, 8
      %s226 = scalar_lea.vmem %s4, %s225
      %s227 = smul.u32 8, %s20
      %s228 = smul.u32 2, %s21
      %p229 = scmp.lt.s32.totalorder %s227, 15
      %s230 = scalar_select %p229, %s227, 15
      %p231 = scmp.lt.s32.totalorder %s228, 1
      %s232 = scalar_select %p231, %s228, 1
      %s233 = smul.addr %s230, 2
      %s234 = sadd.s32 %s232, %s233
      %s235 = smul.addr %s234, 4
      %s236 = scalar_lea.vmem %s0, %s235
      %s237 = smul.u32 8, %s20
      %s238 = smul.u32 2, %s21
      %s239 = smul.u32 8, %s20
      %p240 = scmp.lt.s32.totalorder %s239, 15
      %s241 = scalar_select %p240, %s239, 15
      %s242 = smul.addr %s241, 4
      %s243 = scalar_lea.vmem %s2, %s242
      %s244 = smul.u32 8, %s20
      %p245 = scmp.lt.s32.totalorder %s20, 1
      %s246 = scalar_select %p245, %s20, 1
      %s247 = smul.addr %s246, 8
      %s248 = scalar_lea.vmem %s3, %s247
      %p249 = scmp.lt.s32.totalorder %s20, 1
      %s250 = scalar_select %p249, %s20, 1
      %s251 = smul.addr %s250, 8
      %s252 = scalar_lea.vmem %s4, %s251
      %p254 = scmp.eq.s32.totalorder %s21, 0
      // Predicated region
      $region29: #{residual_block_forward.7} parent=27 // pred_check
        %p255 = pneg %p254
      $region30: #{residual_block_forward.7} parent=27 // pred_check_branch
        %257 = sbr.rel (%p255) target = $region32
      $region31: #{residual_block_forward.7} parent=27 // pred_region
        %258 = vst [vmem:[#allocation2] sm:$0xff] 0.0
        %259 = vst [vmem:[#allocation2 + $0x8] sm:$0xff] 0.0
        %260 = vst [vmem:[#allocation2 + $0x10] sm:$0xff] 0.0
        %261 = vst [vmem:[#allocation2 + $0x18] sm:$0xff] 0.0
        %262 = vst [vmem:[#allocation2 + $0x20] sm:$0xff] 0.0
        %263 = vst [vmem:[#allocation2 + $0x28] sm:$0xff] 0.0
        %264 = vst [vmem:[#allocation2 + $0x30] sm:$0xff] 0.0
        %265 = vst [vmem:[#allocation2 + $0x38] sm:$0xff] 0.0
      $region32: #{residual_block_forward.7} parent=27 // pred_fallthru
        _
      %v266 = vld [vmem:[%s1] sm:$0xf]
      %v267 = vld [vmem:[%s1 + $0x4] sm:$0xf]
      %v268 = vld [vmem:[%s1 + $0x8] sm:$0xf]
      %v269 = vld [vmem:[%s1 + $0xc] sm:$0xf]
      %v270 = vld [vmem:[%s1 + $0x10] sm:$0xf]
      %v271 = vld [vmem:[%s1 + $0x14] sm:$0xf]
      %v272 = vld [vmem:[%s1 + $0x18] sm:$0xf]
      %v273 = vld [vmem:[%s1 + $0x1c] sm:$0xf]
      %v274 = vld [vmem:[%s1 + $0x20] sm:$0xf]
      %v275 = vld [vmem:[%s1 + $0x24] sm:$0xf]
      %v276 = vld [vmem:[%s1 + $0x28] sm:$0xf]
      %v277 = vld [vmem:[%s1 + $0x2c] sm:$0xf]
      %v278 = vld [vmem:[%s1 + $0x30] sm:$0xf]
      %v279 = vld [vmem:[%s1 + $0x34] sm:$0xf]
      %v280 = vld [vmem:[%s1 + $0x38] sm:$0xf]
      %v281 = vld [vmem:[%s1 + $0x3c] sm:$0xf]
      %v282 = vld [vmem:[%s1 + $0x40] sm:$0xf]
      %v283 = vld [vmem:[%s1 + $0x44] sm:$0xf]
      %v284 = vld [vmem:[%s1 + $0x48] sm:$0xf]
      %v285 = vld [vmem:[%s1 + $0x4c] sm:$0xf]
      %v286 = vld [vmem:[%s1 + $0x50] sm:$0xf]
      %v287 = vld [vmem:[%s1 + $0x54] sm:$0xf]
      %v288 = vld [vmem:[%s1 + $0x58] sm:$0xf]
      %v289 = vld [vmem:[%s1 + $0x5c] sm:$0xf]
      %v290 = vld [vmem:[%s1 + $0x60] sm:$0xf]
      %v291 = vld [vmem:[%s1 + $0x64] sm:$0xf]
      %v292 = vld [vmem:[%s1 + $0x68] sm:$0xf]
      %v293 = vld [vmem:[%s1 + $0x6c] sm:$0xf]
      %v294 = vld [vmem:[%s1 + $0x70] sm:$0xf]
      %v295 = vld [vmem:[%s1 + $0x74] sm:$0xf]
      %v296 = vld [vmem:[%s1 + $0x78] sm:$0xf]
      %v297 = vld [vmem:[%s1 + $0x7c] sm:$0xf]
      %v298 = vld [vmem:[#allocation2] sm:$0xff]
      %v299 = vld [vmem:[#allocation2 + $0x8] sm:$0xff]
      %v300 = vld [vmem:[#allocation2 + $0x10] sm:$0xff]
      %v301 = vld [vmem:[#allocation2 + $0x18] sm:$0xff]
      %v302 = vld [vmem:[#allocation2 + $0x20] sm:$0xff]
      %v303 = vld [vmem:[#allocation2 + $0x28] sm:$0xff]
      %v304 = vld [vmem:[#allocation2 + $0x30] sm:$0xff]
      %v305 = vld [vmem:[#allocation2 + $0x38] sm:$0xff]
      %v306 = vld [vmem:[%s236] sm:$0xff]
      %v307 = vld [vmem:[%s236 + $0x8] sm:$0xff]
      %v308 = vld [vmem:[%s236 + $0x10] sm:$0xff]
      %v309 = vld [vmem:[%s236 + $0x18] sm:$0xff]
      %v310 = vld [vmem:[%s236 + $0x20] sm:$0xff]
      %v311 = vld [vmem:[%s236 + $0x28] sm:$0xff]
      %v312 = vld [vmem:[%s236 + $0x30] sm:$0xff]
      %v313 = vld [vmem:[%s236 + $0x38] sm:$0xff]
      %v322 = vunpack.c.l.b16 %v306
      %v323 = vunpack.c.h.b16 %v306
      %v324 = vunpack.c.l.b16 %v307
      %v325 = vunpack.c.h.b16 %v307
      %v326 = vunpack.c.l.b16 %v308
      %v327 = vunpack.c.h.b16 %v308
      %v328 = vunpack.c.l.b16 %v309
      %v329 = vunpack.c.h.b16 %v309
      %v330 = vunpack.c.l.b16 %v310
      %v331 = vunpack.c.h.b16 %v310
      %v332 = vunpack.c.l.b16 %v311
      %v333 = vunpack.c.h.b16 %v311
      %v334 = vunpack.c.l.b16 %v312
      %v335 = vunpack.c.h.b16 %v312
      %v336 = vunpack.c.l.b16 %v313
      %v337 = vunpack.c.h.b16 %v313
      %v338 = vpack.c.b16 %v324, %v322
      %v339 = vpack.c.b16 %v325, %v323
      %v340 = vpack.c.b16 %v328, %v326
      %v341 = vpack.c.b16 %v329, %v327
      %v342 = vpack.c.b16 %v332, %v330
      %v343 = vpack.c.b16 %v333, %v331
      %v344 = vpack.c.b16 %v336, %v334
      %v345 = vpack.c.b16 %v337, %v335
      %v386 = vunpack.c.l.b16 %v266
      %v387 = vunpack.c.l.b16 %v267
      %v388 = vunpack.c.l.b16 %v268
      %v389 = vunpack.c.l.b16 %v269
      %v390 = vunpack.c.l.b16 %v270
      %v391 = vunpack.c.l.b16 %v271
      %v392 = vunpack.c.l.b16 %v272
      %v393 = vunpack.c.l.b16 %v273
      %v394 = vunpack.c.l.b16 %v274
      %v395 = vunpack.c.l.b16 %v275
      %v396 = vunpack.c.l.b16 %v276
      %v397 = vunpack.c.l.b16 %v277
      %v398 = vunpack.c.l.b16 %v278
      %v399 = vunpack.c.l.b16 %v279
      %v400 = vunpack.c.l.b16 %v280
      %v401 = vunpack.c.l.b16 %v281
      %v402 = vunpack.c.l.b16 %v282
      %v403 = vunpack.c.l.b16 %v283
      %v404 = vunpack.c.l.b16 %v284
      %v405 = vunpack.c.l.b16 %v285
      %v406 = vunpack.c.l.b16 %v286
      %v407 = vunpack.c.l.b16 %v287
      %v408 = vunpack.c.l.b16 %v288
      %v409 = vunpack.c.l.b16 %v289
      %v410 = vunpack.c.l.b16 %v290
      %v411 = vunpack.c.l.b16 %v291
      %v412 = vunpack.c.l.b16 %v292
      %v413 = vunpack.c.l.b16 %v293
      %v414 = vunpack.c.l.b16 %v294
      %v415 = vunpack.c.l.b16 %v295
      %v416 = vunpack.c.l.b16 %v296
      %v417 = vunpack.c.l.b16 %v297
      %v418 = vpack.c.b16 %v387, %v386
      %v419 = vpack.c.b16 %v389, %v388
      %v420 = vpack.c.b16 %v391, %v390
      %v421 = vpack.c.b16 %v393, %v392
      %v422 = vpack.c.b16 %v395, %v394
      %v423 = vpack.c.b16 %v397, %v396
      %v424 = vpack.c.b16 %v399, %v398
      %v425 = vpack.c.b16 %v401, %v400
      %v426 = vpack.c.b16 %v403, %v402
      %v427 = vpack.c.b16 %v405, %v404
      %v428 = vpack.c.b16 %v407, %v406
      %v429 = vpack.c.b16 %v409, %v408
      %v430 = vpack.c.b16 %v411, %v410
      %v431 = vpack.c.b16 %v413, %v412
      %v432 = vpack.c.b16 %v415, %v414
      %v433 = vpack.c.b16 %v417, %v416
      %450 = vmatprep.subr.bf16.mxu0 0
      %451 = vmatpush1.bf16.msra.mxu0 %v418
      %452 = vmatprep.subr.bf16.mxu0 0
      %453 = vmatpush1.bf16.msra.mxu0 %v419
      %454 = vmatprep.subr.bf16.mxu0 0
      %455 = vmatpush1.bf16.msra.mxu0 %v420
      %456 = vmatprep.subr.bf16.mxu0 0
      %457 = vmatpush1.bf16.msra.mxu0 %v421
      %458 = vmatprep.subr.bf16.mxu0 0
      %459 = vmatpush1.bf16.msra.mxu0 %v422
      %460 = vmatprep.subr.bf16.mxu0 0
      %461 = vmatpush1.bf16.msra.mxu0 %v423
      %462 = vmatprep.subr.bf16.mxu0 0
      %463 = vmatpush1.bf16.msra.mxu0 %v424
      %464 = vmatprep.subr.bf16.mxu0 0
      %465 = vmatpush1.bf16.msra.mxu0 %v425
      %466 = vmatprep.subr.bf16.mxu0 0
      %467 = vmatpush1.bf16.msra.mxu0 %v426
      %468 = vmatprep.subr.bf16.mxu0 0
      %469 = vmatpush1.bf16.msra.mxu0 %v427
      %470 = vmatprep.subr.bf16.mxu0 0
      %471 = vmatpush1.bf16.msra.mxu0 %v428
      %472 = vmatprep.subr.bf16.mxu0 0
      %473 = vmatpush1.bf16.msra.mxu0 %v429
      %474 = vmatprep.subr.bf16.mxu0 0
      %475 = vmatpush1.bf16.msra.mxu0 %v430
      %476 = vmatprep.subr.bf16.mxu0 0
      %477 = vmatpush1.bf16.msra.mxu0 %v431
      %478 = vmatprep.subr.bf16.mxu0 0
      %479 = vmatpush1.bf16.msra.mxu0 %v432
      %480 = vmatprep.subr.bf16.mxu0 0
      %481 = vmatpush1.bf16.msra.mxu0 %v433
      %482 = vmatprep.mubr.bf16.mxu0 %v339
      %483 = vmatmul.mubr.bf16.gmra.mrb[0].mxu0 %v338
      %v484 = vpop.f32.mrb[0].mxu0
      %v485 = vadd.f32 0.0, %v484
      %v486 = vpop.f32.mrb[0].mxu0
      %v487 = vpop.f32.mrb[0].mxu0
      %v488 = vadd.f32 0.0, %v487
      %v489 = vpop.f32.mrb[0].mxu0
      %490 = vmatprep.mubr.bf16.mxu0 %v341
      %491 = vmatmul.mubr.bf16.gmra.mrb[0].mxu0 %v340
      %v492 = vpop.f32.mrb[0].mxu0
      %v493 = vadd.f32 0.0, %v492
      %v494 = vpop.f32.mrb[0].mxu0
      %v495 = vpop.f32.mrb[0].mxu0
      %v496 = vadd.f32 0.0, %v495
      %v497 = vpop.f32.mrb[0].mxu0
      %498 = vmatprep.mubr.bf16.mxu0 %v343
      %499 = vmatmul.mubr.bf16.gmra.mrb[0].mxu0 %v342
      %v500 = vpop.f32.mrb[0].mxu0
      %v501 = vadd.f32 0.0, %v500
      %v502 = vpop.f32.mrb[0].mxu0
      %v503 = vpop.f32.mrb[0].mxu0
      %v504 = vadd.f32 0.0, %v503
      %v505 = vpop.f32.mrb[0].mxu0
      %506 = vmatprep.mubr.bf16.mxu0 %v345
      %507 = vmatmul.mubr.bf16.gmra.mrb[0].mxu0 %v344
      %v508 = vpop.f32.mrb[0].mxu0
      %v509 = vadd.f32 0.0, %v508
      %v510 = vpop.f32.mrb[0].mxu0
      %v511 = vpop.f32.mrb[0].mxu0
      %v512 = vadd.f32 0.0, %v511
      %v513 = vpop.f32.mrb[0].mxu0
      %514 = vdwg.mxu0
      %v515 = vadd.f32 %v298, %v485
      %v516 = vadd.f32 %v299, %v488
      %v517 = vadd.f32 %v300, %v493
      %v518 = vadd.f32 %v301, %v496
      %v519 = vadd.f32 %v302, %v501
      %v520 = vadd.f32 %v303, %v504
      %v521 = vadd.f32 %v304, %v509
      %v522 = vadd.f32 %v305, %v512
      %523 = vst [vmem:[#allocation2] sm:$0xff] %v515
      %524 = vst [vmem:[#allocation2 + $0x8] sm:$0xff] %v516
      %525 = vst [vmem:[#allocation2 + $0x10] sm:$0xff] %v517
      %526 = vst [vmem:[#allocation2 + $0x18] sm:$0xff] %v518
      %527 = vst [vmem:[#allocation2 + $0x20] sm:$0xff] %v519
      %528 = vst [vmem:[#allocation2 + $0x28] sm:$0xff] %v520
      %529 = vst [vmem:[#allocation2 + $0x30] sm:$0xff] %v521
      %530 = vst [vmem:[#allocation2 + $0x38] sm:$0xff] %v522
      // Predicated region
      $region33: #{residual_block_forward.7} parent=27 // pred_check
        %p531 = pneg %p254
      $region34: #{residual_block_forward.7} parent=27 // pred_check_branch
        %533 = sbr.rel (%p531) target = $region36
      $region35: #{residual_block_forward.7} parent=27 // pred_region
        %v534 = vld [vmem:[#allocation2] sm:$0xff]
        %v535 = vld [vmem:[#allocation2 + $0x8] sm:$0xff]
        %v536 = vld [vmem:[#allocation2 + $0x10] sm:$0xff]
        %v537 = vld [vmem:[#allocation2 + $0x18] sm:$0xff]
        %v538 = vld [vmem:[#allocation2 + $0x20] sm:$0xff]
        %v539 = vld [vmem:[#allocation2 + $0x28] sm:$0xff]
        %v540 = vld [vmem:[#allocation2 + $0x30] sm:$0xff]
        %v541 = vld [vmem:[#allocation2 + $0x38] sm:$0xff]
        %v542 = vpack.c.bf16 %v535, %v534
        %v543 = vpack.c.bf16 %v537, %v536
        %v544 = vpack.c.bf16 %v539, %v538
        %v545 = vpack.c.bf16 %v541, %v540
        %v550 = vunpack.c.l.b16 %v542
        %v551 = vunpack.c.h.b16 %v542
        %v552 = vunpack.c.l.b16 %v543
        %v553 = vunpack.c.h.b16 %v543
        %v554 = vunpack.c.l.b16 %v544
        %v555 = vunpack.c.h.b16 %v544
        %v556 = vunpack.c.l.b16 %v545
        %v557 = vunpack.c.h.b16 %v545
        %v558 = vpack.c.b16 %v550, %v550
        %v559 = vpack.c.b16 %v551, %v551
        %v560 = vpack.c.b16 %v552, %v552
        %v561 = vpack.c.b16 %v553, %v553
        %v562 = vpack.c.b16 %v554, %v554
        %v563 = vpack.c.b16 %v555, %v555
        %v564 = vpack.c.b16 %v556, %v556
        %v565 = vpack.c.b16 %v557, %v557
        %574 = vst [vmem:[%s243] sm:$0xf] %v558
        %575 = vst [vmem:[%s243 + $0x4] sm:$0xf] %v559
        %576 = vst [vmem:[%s243 + $0x8] sm:$0xf] %v560
        %577 = vst [vmem:[%s243 + $0xc] sm:$0xf] %v561
        %578 = vst [vmem:[%s243 + $0x10] sm:$0xf] %v562
        %579 = vst [vmem:[%s243 + $0x14] sm:$0xf] %v563
        %580 = vst [vmem:[%s243 + $0x18] sm:$0xf] %v564
        %581 = vst [vmem:[%s243 + $0x1c] sm:$0xf] %v565
        %v582 = vadd.f32 %v534, %v535
        %v583 = vadd.f32 %v582, %v536
        %v584 = vadd.f32 %v583, %v537
        %v585 = vadd.f32 %v584, %v538
        %v586 = vadd.f32 %v585, %v539
        %v587 = vadd.f32 %v586, %v540
        %v588 = vadd.f32 %v587, %v541
        %v589 = vrot.slane %v588, 4
        %v590 = vadd.f32 %v588, %v589
        %v591 = vrot.slane %v590, 2
        %v592 = vadd.f32 %v590, %v591
        %v593 = vrot.slane %v592, 1
        %v594 = vadd.f32 %v592, %v593
        %595 = vst [vmem:[%s248] sm:$0xff] %v594
        %v596 = vmul.f32 %v534, %v534
        %v597 = vmul.f32 %v535, %v535
        %v598 = vmul.f32 %v536, %v536
        %v599 = vmul.f32 %v537, %v537
        %v600 = vmul.f32 %v538, %v538
        %v601 = vmul.f32 %v539, %v539
        %v602 = vmul.f32 %v540, %v540
        %v603 = vmul.f32 %v541, %v541
        %v604 = vadd.f32 %v596, %v597
        %v605 = vadd.f32 %v604, %v598
        %v606 = vadd.f32 %v605, %v599
        %v607 = vadd.f32 %v606, %v600
        %v608 = vadd.f32 %v607, %v601
        %v609 = vadd.f32 %v608, %v602
        %v610 = vadd.f32 %v609, %v603
        %v611 = vrot.slane %v610, 4
        %v612 = vadd.f32 %v610, %v611
        %v613 = vrot.slane %v612, 2
        %v614 = vadd.f32 %v612, %v613
        %v615 = vrot.slane %v614, 1
        %v616 = vadd.f32 %v614, %v615
        %617 = vst [vmem:[%s252] sm:$0xff] %v616
      $region36: #{residual_block_forward.7} parent=27 // pred_fallthru
        _
      %s618 = smul.u32 8, %s20
      %p619 = scmp.lt.s32.totalorder %s618, 15
      %s620 = scalar_select %p619, %s618, 15
      %s621 = smul.addr %s620, 4
      %s622 = scalar_lea.vmem %s2, %s621
      %p623 = scmp.lt.s32.totalorder %s20, 1
      %s624 = scalar_select %p623, %s20, 1
      %s625 = smul.addr %s624, 8
      %s626 = scalar_lea.vmem %s3, %s625
      %p627 = scmp.lt.s32.totalorder %s20, 1
      %s628 = scalar_select %p627, %s20, 1
      %s629 = smul.addr %s628, 8
      %s630 = scalar_lea.vmem %s4, %s629
      // Predicated region
      $region37: #{residual_block_forward.7} parent=27 // pred_check
        %p631 = pneg %p95
      $region38: #{residual_block_forward.7} parent=27 // pred_check_branch
        %633 = sbr.rel (%p631) target = $region40
      $region39: #{residual_block_forward.7} parent=27 // pred_region
        %s634 = smul.u32 8, %s20
      $region40: #{residual_block_forward.7} parent=27 // pred_fallthru
        _
      // Predicated region
      $region41: #{residual_block_forward.7} parent=27 // pred_check
        %p635 = pneg %p121
      $region42: #{residual_block_forward.7} parent=27 // pred_check_branch
        %637 = sbr.rel (%p635) target = $region44
      $region43: #{residual_block_forward.7} parent=27 // pred_region
        _
      $region44: #{residual_block_forward.7} parent=27 // pred_fallthru
        _
      // Predicated region
      $region45: #{residual_block_forward.7} parent=27 // pred_check
        %p638 = pneg %p147
      $region46: #{residual_block_forward.7} parent=27 // pred_check_branch
        %640 = sbr.rel (%p638) target = $region48
      $region47: #{residual_block_forward.7} parent=27 // pred_region
        _
      $region48: #{residual_block_forward.7} parent=27 // pred_fallthru
        _
    $region28: #{residual_block_forward.7} parent=5 // pred_fallthru
      _
    %p641 = scmp.le.s32.totalorder 2, %s11
    // Predicated region
    $region49: #{residual_block_forward.7} parent=5 // pred_check
      %p642 = pneg %p641
    $region50: #{residual_block_forward.7} parent=5 // pred_check_branch
      %644 = sbr.rel (%p642) target = $region52
    $region51: #{residual_block_forward.7} parent=5 // pred_region
      %s645 = ssub.s32 %s11, 2
      // Predicated region
      $region53: #{residual_block_forward.7} parent=51 // pred_check
        %p646 = pneg %p101
      $region54: #{residual_block_forward.7} parent=51 // pred_check_branch
        %648 = sbr.rel (%p646) target = $region56
      $region55: #{residual_block_forward.7} parent=51 // pred_region
        %s649 = smul.u32 8, %s22
        %p650 = scmp.lt.s32.totalorder %s649, 15
        %s651 = scalar_select %p650, %s649, 15
        %s652 = smul.addr %s651, 4
        %s653 = scalar_lea.vmem %s2, %s652
      $region56: #{residual_block_forward.7} parent=51 // pred_fallthru
        _
      // Predicated region
      $region57: #{residual_block_forward.7} parent=51 // pred_check
        %p654 = pneg %p127
      $region58: #{residual_block_forward.7} parent=51 // pred_check_branch
        %656 = sbr.rel (%p654) target = $region60
      $region59: #{residual_block_forward.7} parent=51 // pred_region
        %p657 = scmp.lt.s32.totalorder %s22, 1
        %s658 = scalar_select %p657, %s22, 1
        %s659 = smul.addr %s658, 8
        %s660 = scalar_lea.vmem %s3, %s659
      $region60: #{residual_block_forward.7} parent=51 // pred_fallthru
        _
      // Predicated region
      $region61: #{residual_block_forward.7} parent=51 // pred_check
        %p661 = pneg %p153
      $region62: #{residual_block_forward.7} parent=51 // pred_check_branch
        %663 = sbr.rel (%p661) target = $region64
      $region63: #{residual_block_forward.7} parent=51 // pred_region
        %p664 = scmp.lt.s32.totalorder %s22, 1
        %s665 = scalar_select %p664, %s22, 1
        %s666 = smul.addr %s665, 8
        %s667 = scalar_lea.vmem %s4, %s666
      $region64: #{residual_block_forward.7} parent=51 // pred_fallthru
        _
    $region52: #{residual_block_forward.7} parent=5 // pred_fallthru
      _
  $region6: #{residual_block_forward.7} parent=0 // loop_footer
    %s15 = sadd.s32 1, %s11
  $region7: #{residual_block_forward.7} parent=0 // loop_footer_branch
    %10 = sbr.rel target = $region3
  $region8: #{residual_block_forward.7} parent=0 // loop_exit
    _

// kernel: residual_block_forward.9
$region0: #{residual_block_forward.9}
  #allocation0 [shape = 'u32[]', space=smem, size = 0x4, offset = 0x4, fixed_abs, tag = 'smem constant byte address 0x4 - core index']
  #allocation1 [shape = 'u32[144,128]{1,0:T(1,128)}', space=vmem, size = 0x12000, scoped, tag = 'internal scratch']
  %s0 = inlined_call_operand.vmem [shape: bf16[128,128], index: 0, kind: input, shape index: {}]
  %s1 = inlined_call_operand.vmem [shape: f32[1,128], index: 1, kind: input, shape index: {}]
  %s2 = inlined_call_operand.vmem [shape: f32[1,128], index: 2, kind: input, shape index: {}]
  %s3 = inlined_call_operand.vmem [shape: bf16[128,128], index: 3, kind: input, shape index: {}]
  %s4 = inlined_call_operand.vmem [shape: f32[1,128], index: 4, kind: input, shape index: {}]
  %s5 = inlined_call_operand.vmem [shape: f32[1,128], index: 5, kind: input, shape index: {}]
  %s6 = inlined_call_operand.hbm [shape: f32[128,128], index: 6, kind: output, shape index: {}]
  %s7 = sld [smem:[#allocation0]]
  $region57: #{residual_block_forward.9} parent=0
    _
  %s9 = ssub.s32 1, %s7
  %s10 = scalar_select 0, %s9, %s7
  $region1: #{residual_block_forward.9} parent=0
    #allocation2 [shape = 'u8[65536]{0}', space=vmem, size = 0x10000, scoped, tag = 'output window, operand 0']
    #allocation3 [shape = 's32[2]{0}', space=sflag, size = 0x8, scoped, tag = 'scoped memory for residual_block_forward.9']
    %11 = vsyncpa [#allocation3], 0
    %s12 = scalar_lea.sflag [#allocation3], 1
    %13 = vsyncpa %s12, 0
    loop: start=0, step=1, limit=4
    $region2: #{residual_block_forward.9} parent=1 // loop_pre_header
      _
    $region3: #{residual_block_forward.9} parent=1 // loop_header
      %s15 = sphi 0, %s19
      %p16 = scmp.ge.s32.totalorder %s15, 4
      %s25 = sphi 0, %s27
      %s28 = sphi 0, %s25
      %s29 = sphi 0, %s28
      %s45 = sphi 0, %s29
      %s49 = sphi 0, %s49
      %s51 = sphi 0, %s49
      %s52 = sphi 0, %s51
      %s66 = sphi 0, %s52
      %s70 = sphi 0, %s70
      %s72 = sphi 0, %s70
      %s73 = sphi 0, %s72
      %s87 = sphi 0, %s73
      %s93 = sphi 0, %s95
      %s96 = sphi 0, %s93
      %s97 = sphi 0, %s96
      %s113 = sphi 0, %s97
      %s117 = sphi 0, %s117
      %s119 = sphi 0, %s117
      %s120 = sphi 0, %s119
      %s134 = sphi 0, %s120
      %s138 = sphi 0, %s138
      %s140 = sphi 0, %s138
      %s141 = sphi 0, %s140
      %s155 = sphi 0, %s141
      %s161 = sphi 0, %s163
      %s164 = sphi 0, %s161
      %s165 = sphi 0, %s164
      %s181 = sphi 0, %s165
    $region4: #{residual_block_forward.9} parent=1 // loop_header_branch
      %18 = sbr.rel (%p16) target = $region8
    $region5: #{residual_block_forward.9} parent=1 // loop_body
      %s20 = ssub.s32 %s15, 1
      %s21 = ssub.s32 %s15, 2
      %s22 = sadd.s32 %s15, 1
      %s23 = ssub.s32 %s15, %s22
      %p24 = scmp.eq.s32.totalorder %s23, 0
      %s26 = sadd.s32 %s25, 1
      %s27 = scalar_select %p24, %s25, %s26
      %p30 = pneg %p24
      %p31 = scmp.eq.s32.totalorder %s15, 1
      %p32 = por %p30, %p31
      %p33 = scmp.ne.s32.totalorder %s25, %s28
      %p34 = scmp.eq.s32.totalorder %s15, 0
      %p35 = por %p33, %p34
      %p36 = scmp.ne.s32.totalorder %s25, %s28
      %p37 = scmp.eq.s32.totalorder %s20, 1
      %p38 = por %p36, %p37
      %p39 = scmp.ne.s32.totalorder %s28, %s29
      %p40 = scmp.eq.s32.totalorder %s20, 0
      %p41 = por %p39, %p40
      %p42 = scmp.ne.s32.totalorder %s28, %s29
      %p43 = scmp.eq.s32.totalorder %s21, 1
      %p44 = por %p42, %p43
      %p46 = scmp.ne.s32.totalorder %s29, %s45
      %p47 = scmp.eq.s32.totalorder %s21, 0
      %p48 = por %p46, %p47
      %s50 = sadd.s32 %s49, 1
      %p53 = scmp.eq.s32.totalorder %s15, 1
      %p54 = scmp.ne.s32.totalorder %s49, %s51
      %p55 = scmp.eq.s32.totalorder %s15, 0
      %p56 = por %p54, %p55
      %p57 = scmp.ne.s32.totalorder %s49, %s51
      %p58 = scmp.eq.s32.totalorder %s20, 1
      %p59 = por %p57, %p58
      %p60 = scmp.ne.s32.totalorder %s51, %s52
      %p61 = scmp.eq.s32.totalorder %s20, 0
      %p62 = por %p60, %p61
      %p63 = scmp.ne.s32.totalorder %s51, %s52
      %p64 = scmp.eq.s32.totalorder %s21, 1
      %p65 = por %p63, %p64
      %p67 = scmp.ne.s32.totalorder %s52, %s66
      %p68 = scmp.eq.s32.totalorder %s21, 0
      %p69 = por %p67, %p68
      %s71 = sadd.s32 %s70, 1
      %p74 = scmp.eq.s32.totalorder %s15, 1
      %p75 = scmp.ne.s32.totalorder %s70, %s72
      %p76 = scmp.eq.s32.totalorder %s15, 0
      %p77 = por %p75, %p76
      %p78 = scmp.ne.s32.totalorder %s70, %s72
      %p79 = scmp.eq.s32.totalorder %s20, 1
      %p80 = por %p78, %p79
      %p81 = scmp.ne.s32.totalorder %s72, %s73
      %p82 = scmp.eq.s32.totalorder %s20, 0
      %p83 = por %p81, %p82
      %p84 = scmp.ne.s32.totalorder %s72, %s73
      %p85 = scmp.eq.s32.totalorder %s21, 1
      %p86 = por %p84, %p85
      %p88 = scmp.ne.s32.totalorder %s73, %s87
      %p89 = scmp.eq.s32.totalorder %s21, 0
      %p90 = por %p88, %p89
      %s91 = ssub.s32 %s15, %s22
      %p92 = scmp.eq.s32.totalorder %s91, 0
      %s94 = sadd.s32 %s93, 1
      %s95 = scalar_select %p92, %s93, %s94
      %p98 = pneg %p92
      %p99 = scmp.eq.s32.totalorder %s15, 1
      %p100 = por %p98, %p99
      %p101 = scmp.ne.s32.totalorder %s93, %s96
      %p102 = scmp.eq.s32.totalorder %s15, 0
      %p103 = por %p101, %p102
      %p104 = scmp.ne.s32.totalorder %s93, %s96
      %p105 = scmp.eq.s32.totalorder %s20, 1
      %p106 = por %p104, %p105
      %p107 = scmp.ne.s32.totalorder %s96, %s97
      %p108 = scmp.eq.s32.totalorder %s20, 0
      %p109 = por %p107, %p108
      %p110 = scmp.ne.s32.totalorder %s96, %s97
      %p111 = scmp.eq.s32.totalorder %s21, 1
      %p112 = por %p110, %p111
      %p114 = scmp.ne.s32.totalorder %s97, %s113
      %p115 = scmp.eq.s32.totalorder %s21, 0
      %p116 = por %p114, %p115
      %s118 = sadd.s32 %s117, 1
      %p121 = scmp.eq.s32.totalorder %s15, 1
      %p122 = scmp.ne.s32.totalorder %s117, %s119
      %p123 = scmp.eq.s32.totalorder %s15, 0
      %p124 = por %p122, %p123
      %p125 = scmp.ne.s32.totalorder %s117, %s119
      %p126 = scmp.eq.s32.totalorder %s20, 1
      %p127 = por %p125, %p126
      %p128 = scmp.ne.s32.totalorder %s119, %s120
      %p129 = scmp.eq.s32.totalorder %s20, 0
      %p130 = por %p128, %p129
      %p131 = scmp.ne.s32.totalorder %s119, %s120
      %p132 = scmp.eq.s32.totalorder %s21, 1
      %p133 = por %p131, %p132
      %p135 = scmp.ne.s32.totalorder %s120, %s134
      %p136 = scmp.eq.s32.totalorder %s21, 0
      %p137 = por %p135, %p136
      %s139 = sadd.s32 %s138, 1
      %p142 = scmp.eq.s32.totalorder %s15, 1
      %p143 = scmp.ne.s32.totalorder %s138, %s140
      %p144 = scmp.eq.s32.totalorder %s15, 0
      %p145 = por %p143, %p144
      %p146 = scmp.ne.s32.totalorder %s138, %s140
      %p147 = scmp.eq.s32.totalorder %s20, 1
      %p148 = por %p146, %p147
      %p149 = scmp.ne.s32.totalorder %s140, %s141
      %p150 = scmp.eq.s32.totalorder %s20, 0
      %p151 = por %p149, %p150
      %p152 = scmp.ne.s32.totalorder %s140, %s141
      %p153 = scmp.eq.s32.totalorder %s21, 1
      %p154 = por %p152, %p153
      %p156 = scmp.ne.s32.totalorder %s141, %s155
      %p157 = scmp.eq.s32.totalorder %s21, 0
      %p158 = por %p156, %p157
      %s159 = ssub.s32 %s15, %s22
      %p160 = scmp.eq.s32.totalorder %s159, 0
      %s162 = sadd.s32 %s161, 1
      %s163 = scalar_select %p160, %s161, %s162
      %p166 = pneg %p160
      %p167 = scmp.eq.s32.totalorder %s15, 1
      %p168 = por %p166, %p167
      %p169 = scmp.ne.s32.totalorder %s161, %s164
      %p170 = scmp.eq.s32.totalorder %s15, 0
      %p171 = por %p169, %p170
      %p172 = scmp.ne.s32.totalorder %s161, %s164
      %p173 = scmp.eq.s32.totalorder %s20, 1
      %p174 = por %p172, %p173
      %p175 = scmp.ne.s32.totalorder %s164, %s165
      %p176 = scmp.eq.s32.totalorder %s20, 0
      %p177 = por %p175, %p176
      %p178 = scmp.ne.s32.totalorder %s164, %s165
      %p179 = scmp.eq.s32.totalorder %s21, 1
      %p180 = por %p178, %p179
      %p182 = scmp.ne.s32.totalorder %s165, %s181
      %p183 = scmp.eq.s32.totalorder %s21, 0
      %p184 = por %p182, %p183
      %p185 = scmp.le.s32.totalorder 1, %s15
      %p186 = scmp.lt.s32.totalorder %s15, 3
      %p187 = pnand %p185, %p186
      %p188 = pneg %p187
      // Predicated region
      $region9: #{residual_block_forward.9} parent=5 // pred_check
        _
      $region10: #{residual_block_forward.9} parent=5 // pred_check_branch
        %190 = sbr.rel (%p187) target = $region12
      $region11: #{residual_block_forward.9} parent=5 // pred_region
        %s191 = ssub.s32 %s15, 1
        // Predicated region
        $region13: #{residual_block_forward.9} parent=11 // pred_check
          %p192 = pneg %p62
        $region14: #{residual_block_forward.9} parent=11 // pred_check_branch
          %194 = sbr.rel (%p192) target = $region16
        $region15: #{residual_block_forward.9} parent=11 // pred_region
          _
        $region16: #{residual_block_forward.9} parent=11 // pred_fallthru
          _
        // Predicated region
        $region17: #{residual_block_forward.9} parent=11 // pred_check
          %p195 = pneg %p83
        $region18: #{residual_block_forward.9} parent=11 // pred_check_branch
          %197 = sbr.rel (%p195) target = $region20
        $region19: #{residual_block_forward.9} parent=11 // pred_region
          _
        $region20: #{residual_block_forward.9} parent=11 // pred_fallthru
          _
        // Predicated region
        $region21: #{residual_block_forward.9} parent=11 // pred_check
          %p198 = pneg %p130
        $region22: #{residual_block_forward.9} parent=11 // pred_check_branch
          %200 = sbr.rel (%p198) target = $region24
        $region23: #{residual_block_forward.9} parent=11 // pred_region
          _
        $region24: #{residual_block_forward.9} parent=11 // pred_fallthru
          _
        // Predicated region
        $region25: #{residual_block_forward.9} parent=11 // pred_check
          %p201 = pneg %p151
        $region26: #{residual_block_forward.9} parent=11 // pred_check_branch
          %203 = sbr.rel (%p201) target = $region28
        $region27: #{residual_block_forward.9} parent=11 // pred_region
          _
        $region28: #{residual_block_forward.9} parent=11 // pred_fallthru
          _
      $region12: #{residual_block_forward.9} parent=5 // pred_fallthru
        _
      %p204 = scmp.lt.s32.totalorder %s15, 2
      // Predicated region
      $region29: #{residual_block_forward.9} parent=5 // pred_check
        %p205 = pneg %p204
      $region30: #{residual_block_forward.9} parent=5 // pred_check_branch
        %207 = sbr.rel (%p205) target = $region32
      $region31: #{residual_block_forward.9} parent=5 // pred_region
        // Predicated region
        $region33: #{residual_block_forward.9} parent=31 // pred_check
          %p208 = pneg %p35
        $region34: #{residual_block_forward.9} parent=31 // pred_check_branch
          %210 = sbr.rel (%p208) target = $region36
        $region35: #{residual_block_forward.9} parent=31 // pred_region
          %s211 = smul.u32 8, %s15
          %p212 = scmp.lt.s32.totalorder %s211, 15
          %s213 = scalar_select %p212, %s211, 15
          %s214 = smul.addr %s213, 4
          %s215 = scalar_lea.vmem %s0, %s214
          %s216 = smul.u32 8, %s15
        $region36: #{residual_block_forward.9} parent=31 // pred_fallthru
          _
        // Predicated region
        $region37: #{residual_block_forward.9} parent=31 // pred_check
          %p217 = pneg %p103
        $region38: #{residual_block_forward.9} parent=31 // pred_check_branch
          %219 = sbr.rel (%p217) target = $region40
        $region39: #{residual_block_forward.9} parent=31 // pred_region
          %s220 = smul.u32 8, %s15
          %p221 = scmp.lt.s32.totalorder %s220, 15
          %s222 = scalar_select %p221, %s220, 15
          %s223 = smul.addr %s222, 4
          %s224 = scalar_lea.vmem %s3, %s223
          %s225 = smul.u32 8, %s15
        $region40: #{residual_block_forward.9} parent=31 // pred_fallthru
          _
      $region32: #{residual_block_forward.9} parent=5 // pred_fallthru
        _
      %p226 = scmp.le.s32.totalorder 1, %s15
      %p227 = scmp.lt.s32.totalorder %s15, 3
      %p228 = pnand %p226, %p227
      %p229 = pneg %p228
      // Predicated region
      $region41: #{residual_block_forward.9} parent=5 // pred_check
        _
      $region42: #{residual_block_forward.9} parent=5 // pred_check_branch
        %231 = sbr.rel (%p228) target = $region44
      $region43: #{residual_block_forward.9} parent=5 // pred_region
        %s232 = ssub.s32 %s15, 1
        %s233 = smul.u32 8, %s20
        %p234 = scmp.lt.s32.totalorder %s233, 15
        %s235 = scalar_select %p234, %s233, 15
        %s236 = smul.addr %s235, 4
        %s237 = scalar_lea.vmem %s0, %s236
        %p238 = pneg %p41
        %p239 = pneg %p38
        %p240 = pneg %p62
        %p241 = pneg %p59
        %p242 = pneg %p83
        %p243 = pneg %p80
        %s244 = smul.u32 8, %s20
        %p245 = scmp.lt.s32.totalorder %s244, 15
        %s246 = scalar_select %p245, %s244, 15
        %s247 = smul.addr %s246, 4
        %s248 = scalar_lea.vmem %s3, %s247
        %p249 = pneg %p109
        %p250 = pneg %p106
        %p251 = pneg %p130
        %p252 = pneg %p127
        %p253 = pneg %p151
        %p254 = pneg %p148
        %p255 = pneg %p177
        %p256 = pneg %p174
        %s257 = sand.u32 %s164, 1
        %s258 = scalar_lea.sflag [#allocation3], %s257
        %s259 = sand.u32 %s164, 1
        %s260 = smul.addr %s259, 64
        %s261 = scalar_lea.vmem [#allocation2], %s260
        %s262 = smul.u32 8, %s20
        %p263 = scmp.lt.s32.totalorder %s262, 15
        %s264 = scalar_select %p263, %s262, 15
        %s265 = smul.addr %s264, 4
        %s266 = scalar_lea.vmem %s0, %s265
        %s267 = smul.u32 8, %s20
        %s268 = smul.u32 8, %s20
        %p269 = scmp.lt.s32.totalorder %s268, 15
        %s270 = scalar_select %p269, %s268, 15
        %s271 = smul.addr %s270, 4
        %s272 = scalar_lea.vmem %s3, %s271
        %s273 = smul.u32 8, %s20
        %s274 = smul.u32 8, %s20
        %v275 = vld [vmem:[%s266] sm:$0xf]
        %v276 = vld [vmem:[%s266 + $0x4] sm:$0xf]
        %v277 = vld [vmem:[%s266 + $0x8] sm:$0xf]
        %v278 = vld [vmem:[%s266 + $0xc] sm:$0xf]
        %v279 = vld [vmem:[%s266 + $0x10] sm:$0xf]
        %v280 = vld [vmem:[%s266 + $0x14] sm:$0xf]
        %v281 = vld [vmem:[%s266 + $0x18] sm:$0xf]
        %v282 = vld [vmem:[%s266 + $0x1c] sm:$0xf]
        %v283 = vld [vmem:[%s1] sm:$0x1]
        %v284 = vunpack.c.l.bf16 %v275
        %v285 = vunpack.c.l.bf16 %v276
        %v286 = vunpack.c.l.bf16 %v277
        %v287 = vunpack.c.l.bf16 %v278
        %v288 = vunpack.c.l.bf16 %v279
        %v289 = vunpack.c.l.bf16 %v280
        %v290 = vunpack.c.l.bf16 %v281
        %v291 = vunpack.c.l.bf16 %v282
        %v293 = vlaneseq
        %v294 = vshrl.u32 %v293, 7
        %v295 = vsub.s32 0, %v294
        %v296 = vrot.slane %v283, %v295
        %v298 = vmul.f32 %v284, %v296
        %v299 = vmul.f32 %v285, %v296
        %v300 = vmul.f32 %v286, %v296
        %v301 = vmul.f32 %v287, %v296
        %v302 = vmul.f32 %v288, %v296
        %v303 = vmul.f32 %v289, %v296
        %v304 = vmul.f32 %v290, %v296
        %v305 = vmul.f32 %v291, %v296
        %v306 = vld [vmem:[%s2] sm:$0x1]
        %v308 = vlaneseq
        %v309 = vshrl.u32 %v308, 7
        %v310 = vsub.s32 0, %v309
        %v311 = vrot.slane %v306, %v310
        %v313 = vadd.f32 %v298, %v311
        %v314 = vadd.f32 %v299, %v311
        %v315 = vadd.f32 %v300, %v311
        %v316 = vadd.f32 %v301, %v311
        %v317 = vadd.f32 %v302, %v311
        %v318 = vadd.f32 %v303, %v311
        %v319 = vadd.f32 %v304, %v311
        %v320 = vadd.f32 %v305, %v311
        %v321 = vld [vmem:[%s272] sm:$0xf]
        %v322 = vld [vmem:[%s272 + $0x4] sm:$0xf]
        %v323 = vld [vmem:[%s272 + $0x8] sm:$0xf]
        %v324 = vld [vmem:[%s272 + $0xc] sm:$0xf]
        %v325 = vld [vmem:[%s272 + $0x10] sm:$0xf]
        %v326 = vld [vmem:[%s272 + $0x14] sm:$0xf]
        %v327 = vld [vmem:[%s272 + $0x18] sm:$0xf]
        %v328 = vld [vmem:[%s272 + $0x1c] sm:$0xf]
        %v329 = vld [vmem:[%s4] sm:$0x1]
        %v330 = vunpack.c.l.bf16 %v321
        %v331 = vunpack.c.l.bf16 %v322
        %v332 = vunpack.c.l.bf16 %v323
        %v333 = vunpack.c.l.bf16 %v324
        %v334 = vunpack.c.l.bf16 %v325
        %v335 = vunpack.c.l.bf16 %v326
        %v336 = vunpack.c.l.bf16 %v327
        %v337 = vunpack.c.l.bf16 %v328
        %v339 = vlaneseq
        %v340 = vshrl.u32 %v339, 7
        %v341 = vsub.s32 0, %v340
        %v342 = vrot.slane %v329, %v341
        %v344 = vmul.f32 %v330, %v342
        %v345 = vmul.f32 %v331, %v342
        %v346 = vmul.f32 %v332, %v342
        %v347 = vmul.f32 %v333, %v342
        %v348 = vmul.f32 %v334, %v342
        %v349 = vmul.f32 %v335, %v342
        %v350 = vmul.f32 %v336, %v342
        %v351 = vmul.f32 %v337, %v342
        %v352 = vadd.f32 %v313, %v344
        %v353 = vadd.f32 %v314, %v345
        %v354 = vadd.f32 %v315, %v346
        %v355 = vadd.f32 %v316, %v347
        %v356 = vadd.f32 %v317, %v348
        %v357 = vadd.f32 %v318, %v349
        %v358 = vadd.f32 %v319, %v350
        %v359 = vadd.f32 %v320, %v351
        %v360 = vld [vmem:[%s5] sm:$0x1]
        %v362 = vlaneseq
        %v363 = vshrl.u32 %v362, 7
        %v364 = vsub.s32 0, %v363
        %v365 = vrot.slane %v360, %v364
        %v367 = vadd.f32 %v352, %v365
        %v368 = vadd.f32 %v353, %v365
        %v369 = vadd.f32 %v354, %v365
        %v370 = vadd.f32 %v355, %v365
        %v371 = vadd.f32 %v356, %v365
        %v372 = vadd.f32 %v357, %v365
        %v373 = vadd.f32 %v358, %v365
        %v374 = vadd.f32 %v359, %v365
        %v375 = vmax.f32 %v367, 0.0
        %v376 = vmax.f32 %v368, 0.0
        %v377 = vmax.f32 %v369, 0.0
        %v378 = vmax.f32 %v370, 0.0
        %v379 = vmax.f32 %v371, 0.0
        %v380 = vmax.f32 %v372, 0.0
        %v381 = vmax.f32 %v373, 0.0
        %v382 = vmax.f32 %v374, 0.0
        %383 = vst [vmem:[%s261] sm:$0xff] %v375
        %384 = vst [vmem:[%s261 + $0x8] sm:$0xff] %v376
        %385 = vst [vmem:[%s261 + $0x10] sm:$0xff] %v377
        %386 = vst [vmem:[%s261 + $0x18] sm:$0xff] %v378
        %387 = vst [vmem:[%s261 + $0x20] sm:$0xff] %v379
        %388 = vst [vmem:[%s261 + $0x28] sm:$0xff] %v380
        %389 = vst [vmem:[%s261 + $0x30] sm:$0xff] %v381
        %390 = vst [vmem:[%s261 + $0x38] sm:$0xff] %v382
        %s391 = sand.u32 %s164, 1
        %s392 = scalar_lea.sflag [#allocation3], %s391
        %s393 = sand.u32 %s164, 1
        %s394 = smul.addr %s393, 64
        %s395 = scalar_lea.vmem [#allocation2], %s394
        // Predicated region
        $region45: #{residual_block_forward.9} parent=43 // pred_check
          %p396 = pneg %p174
        $region46: #{residual_block_forward.9} parent=43 // pred_check_branch
          %398 = sbr.rel (%p396) target = $region48
        $region47: #{residual_block_forward.9} parent=43 // pred_region
          %s399 = smul.u32 8, %s20
          %s401 = ssub.s32 1024, 1024
          %402 = vsyncadd %s392, %s401
          %s403 = smul.addr %s399, 128
          %s404 = scalar_lea.hbm %s6, %s403
          %s405 = sshll.u32 %s395, 4
          %s406 = int_to_ptr.vmem [resolvable:$true] %s405
          %411 = dma.vmem_to_hbm [thread:$0]  %s406, 1024, %s404, %s392, 128, 128, 8
        $region48: #{residual_block_forward.9} parent=43 // pred_fallthru
          _
      $region44: #{residual_block_forward.9} parent=5 // pred_fallthru
        _
      %p412 = scmp.le.s32.totalorder 2, %s15
      // Predicated region
      $region49: #{residual_block_forward.9} parent=5 // pred_check
        %p413 = pneg %p412
      $region50: #{residual_block_forward.9} parent=5 // pred_check_branch
        %415 = sbr.rel (%p413) target = $region52
      $region51: #{residual_block_forward.9} parent=5 // pred_region
        %s416 = ssub.s32 %s15, 2
        // Predicated region
        $region53: #{residual_block_forward.9} parent=51 // pred_check
          %p417 = pneg %p180
        $region54: #{residual_block_forward.9} parent=51 // pred_check_branch
          %419 = sbr.rel (%p417) target = $region56
        $region55: #{residual_block_forward.9} parent=51 // pred_region
          %s420 = sand.u32 %s165, 1
          %s421 = scalar_lea.sflag [#allocation3], %s420
          %s422 = sand.u32 %s165, 1
          %s423 = smul.addr %s422, 64
          %s424 = scalar_lea.vmem [#allocation2], %s423
          %425 = dma.done %s421, 1024
        $region56: #{residual_block_forward.9} parent=51 // pred_fallthru
          _
      $region52: #{residual_block_forward.9} parent=5 // pred_fallthru
        _
    $region6: #{residual_block_forward.9} parent=1 // loop_footer
      %s19 = sadd.s32 1, %s15
    $region7: #{residual_block_forward.9} parent=1 // loop_footer_branch
      %14 = sbr.rel target = $region3
    $region8: #{residual_block_forward.9} parent=1 // loop_exit
      _
    %426 = vsyncpa [#allocation3], 1
    %s427 = scalar_lea.sflag [#allocation3], 1
    %428 = vsyncpa %s427, 1

</llo_original>
